<compile_context>
chip_gen: v6e
topology: v6e:2x2x1
jax: 0.10.0
libtpu: 0.0.40
codegen_flags: <defaults>
</compile_context>

<pallas_src>
import jax
import jax.numpy as jnp
from jax import lax
from jax.experimental import pallas as pl
from jax.experimental.pallas import tpu as pltpu


# ----------------------------------------------------------------------------- #
# Kernel
# ----------------------------------------------------------------------------- #
def blstm_nmc_kernel(x_ref, mx_ref, mh_ref, wih_ref, whh_ref, b_ref,
                     wl_ref, bl_ref, o_ref):
    # x_ref:   (NBc, S)    batch-chunk of (MC-sample x batch) rows, time on lanes
    # mx_ref:  (NBc, S)    input dropout mask * 1/keep
    # mh_ref:  (NBc, FH)   output dropout mask * 1/keep (zero beyond lane H)
    # wih_ref: (1, GW)     gate-replicated W_ih (f32; input_dim == 1)
    # whh_ref: (FH, GW)    gate-replicated W_hh in bfloat16, rows [H:FH] are zero
    # b_ref:   (1, GW)     gate-replicated bias (f32)
    # wl_ref:  (O, FH)     final linear weights (transposed, zero beyond col H)
    # bl_ref:  (1, O)      final linear bias
    # o_ref:   (NBc, O)
    NBc, S = x_ref.shape
    FH, GW = whh_ref.shape            # FH = R*H (one lane block per gate), GW = 4*FH

    whh = whh_ref[...]                # (FH, GW) bf16 — hoisted
    wib = wih_ref[...]                # (1, GW)  f32
    b = b_ref[...]                    # (1, GW)  f32

    # Input dropout (training=True).  input_dim == 1, so x_t @ W_ih is an outer
    # product; its per-step term is computed inside the loop (off the
    # h-dependency chain, hides under the h @ W_hh MXU drain) instead of
    # materializing an (S, NBc, GW) temporary.
    xd = x_ref[...] * mx_ref[...]                              # (NBc, S)

    # h / c carried as loop values; lanes [0:H] hold the true state, the rest is
    # a replicated copy (kept consistent by the gate-replicated weight layout).
    h = jnp.zeros((NBc, FH), jnp.float32)
    c = jnp.zeros((NBc, FH), jnp.float32)

    # Fully unrolled recurrence (S is static & small for this model): cross-step
    # visibility lets the per-step input term and EUP pushes hide under the MXU
    # drain of h @ W_hh.
    # TODO(synk): for long sequences (S >~ 32) switch to
    # lax.fori_loop(..., unroll=4) carrying (h, c) to bound live ranges.
    for t in range(S):
        inp = xd[:, t:t + 1] * wib + b                         # (NBc, GW) f32
        gates = inp + jnp.dot(h.astype(jnp.bfloat16), whh,
                              preferred_element_type=jnp.float32)
        # Gate-major layout [i, f, o, g]: one contiguous sigmoid over the first
        # three FH-wide blocks, one tanh over the last.  Every slice below is a
        # full, lane-aligned gate block -> free vreg slices.
        sg = jax.nn.sigmoid(gates[:, :3 * FH])
        i_t = sg[:, 0 * FH:1 * FH]
        f_t = sg[:, 1 * FH:2 * FH]
        o_t = sg[:, 2 * FH:3 * FH]
        g_t = jnp.tanh(gates[:, 3 * FH:4 * FH])
        c = f_t * c + i_t * g_t
        h = o_t * jnp.tanh(c)

    # Output dropout.  Only the last timestep feeds the linear layer, so masking
    # h_T is semantically identical to masking the full sequence output.
    h_drop = h * mh_ref[...]                                   # (NBc, FH)

    out_dim = o_ref.shape[1]
    if out_dim == 1:
        # Final linear as VPU multiply + lane reduction: avoids a 1-lane-wide MXU
        # pass + FIFO pop for the epilogue.
        o_ref[...] = (jnp.sum(h_drop * wl_ref[...], axis=1, keepdims=True)
                      + bl_ref[...])
    else:
        o_ref[...] = (lax.dot_general(h_drop, wl_ref[...],
                                      (((1,), (1,)), ((), ())),
                                      preferred_element_type=jnp.float32)
                      + bl_ref[...])


# ----------------------------------------------------------------------------- #
# Host-side helpers
# ----------------------------------------------------------------------------- #
def _round_up(a, m):
    return ((a + m - 1) // m) * m


def _expand_gates(w, H, R):
    """(rows, 4H) in blitz gate order [i, f, g, o] -> (rows, 4*R*H) in kernel
    order [i, f, o, g], each H-wide gate block replicated R times (vreg-lane
    alignment for H < 128)."""
    rows = w.shape[0]
    w4 = w.reshape(rows, 4, H)[:, jnp.array([0, 1, 3, 2]), :]
    w4 = jnp.broadcast_to(w4[:, :, None, :], (rows, 4, R, H))
    return w4.reshape(rows, 4 * R * H)


def init_params(key, input_dim, hidden_size, output_dim):
    assert input_dim == 1, "module reshapes x to (B, S, 1)"
    k = jax.random.split(key, 5)
    H = hidden_size
    return {
        "w_ih":  0.1 * jax.random.normal(k[0], (input_dim, 4 * H), jnp.float32),
        "w_hh":  0.1 * jax.random.normal(k[1], (H, 4 * H), jnp.float32),
        "b":     0.1 * jax.random.normal(k[2], (1, 4 * H), jnp.float32),
        "w_lin": 0.1 * jax.random.normal(k[3], (H, output_dim), jnp.float32),
        "b_lin": 0.1 * jax.random.normal(k[4], (1, output_dim), jnp.float32),
    }


def blstm_nmc_forward(x, params, drop_rate, *, n_samples=1, drop_key=None,
                      masks=None, num_chunks=None):
    """Batched MC-dropout forward.  Returns (n_samples, batch, output_dim)."""
    B, S = x.shape
    H = params["w_hh"].shape[0]
    O = params["w_lin"].shape[1]
    assert params["w_ih"].shape[0] == 1
    keep = 1.0 - drop_rate

    R = max(1, 128 // H)          # gate replication factor (lane alignment only)
    FH, GW = R * H, 4 * R * H
    NB = n_samples * B

    if num_chunks is None:
        # Default: ONE chunk (v5e/v6e have a single TensorCore — chunking there
        # just repeats the serial chain).  Only chunk when a single block would
        # stress the default scoped VMEM budget.
        bytes_per_row = 4 * (4 * S + 4 * FH + 2 * O + 3 * GW)   # rough f32 estimate
        max_rows = max(128, (12 << 20) // bytes_per_row)
        num_chunks = max(1, -(-NB // max_rows))
        # TODO(synk): on v7x (2 TCs) pass num_chunks=2 explicitly at large NB to
        # shard the "parallel" grid axis across both TensorCores.

    NB_pad = _round_up(max(NB, 8), 8 * num_chunks)
    NBc = NB_pad // num_chunks

    if masks is None:
        k1, k2 = jax.random.split(drop_key)
        mx = jax.random.bernoulli(k1, keep, (NB, S)).astype(jnp.float32) / keep
        mh = jax.random.bernoulli(k2, keep, (NB, H)).astype(jnp.float32) / keep
    else:
        mx, mh = masks
    # TODO(synk): for large n_samples, generate dropout masks in-kernel with
    # pltpu.prng_seed / pltpu.prng_random_bits to drop the two O(NB) HBM streams.

    def pad_rows(a):
        return jnp.pad(a.astype(jnp.float32), ((0, NB_pad - a.shape[0]), (0, 0)))

    x_rows = pad_rows(jnp.tile(x.astype(jnp.float32), (n_samples, 1)))   # (NB_pad, S)
    mx_rows = pad_rows(mx)                                               # (NB_pad, S)
    mh_rows = pad_rows(mh)                                               # (NB_pad, H)
    if R > 1:
        mh_rows = jnp.concatenate(
            [mh_rows, jnp.zeros((NB_pad, (R - 1) * H), jnp.float32)], axis=1)

    # Gate-replicated weights (see kernel docstring).  W_hh goes to bf16 for the
    # MXU; accumulation stays f32 via preferred_element_type in the kernel.
    wih_big = _expand_gates(params["w_ih"].astype(jnp.float32), H, R)    # (1, GW)
    b_big = _expand_gates(params["b"].astype(jnp.float32), H, R)         # (1, GW)
    whh_rep = _expand_gates(params["w_hh"].astype(jnp.float32), H, R)    # (H, GW)
    if R > 1:
        whh_rep = jnp.concatenate(
            [whh_rep, jnp.zeros(((R - 1) * H, GW), jnp.float32)], axis=0)
    whh_big = whh_rep.astype(jnp.bfloat16)                               # (FH, GW)

    wl_pad = params["w_lin"].T.astype(jnp.float32)                       # (O, H)
    if R > 1:
        wl_pad = jnp.concatenate(
            [wl_pad, jnp.zeros((O, (R - 1) * H), jnp.float32)], axis=1)  # (O, FH)
    bl = params["b_lin"].astype(jnp.float32)                             # (1, O)

    row = lambda shape: pl.BlockSpec(shape, lambda i: (i, 0))   # blocked over batch
    rep = lambda shape: pl.BlockSpec(shape, lambda i: (0, 0))   # replicated weights

    out = pl.pallas_call(
        blstm_nmc_kernel,
        out_shape=jax.ShapeDtypeStruct((NB_pad, O), jnp.float32),
        grid=(num_chunks,),
        in_specs=[row((NBc, S)), row((NBc, S)), row((NBc, FH)),
                  rep((1, GW)), rep((FH, GW)), rep((1, GW)),
                  rep((O, FH)), rep((1, O))],
        out_specs=row((NBc, O)),
        compiler_params=pltpu.CompilerParams(
            dimension_semantics=("parallel",)),
    )(x_rows, mx_rows, mh_rows, wih_big, whh_big, b_big, wl_pad, bl)

    return out[:NB].reshape(n_samples, B, O)


def blstm_nmc_reference(x_rows, params, mx, mh):
    """Pure-JAX reference with the same dropout masks.  x_rows: (N, S)."""
    H = params["w_hh"].shape[0]
    w_ih, w_hh, b = params["w_ih"], params["w_hh"], params["b"]
    N, S = x_rows.shape
    xd = x_rows * mx
    h = jnp.zeros((N, H), jnp.float32)
    c = jnp.zeros((N, H), jnp.float32)
    for t in range(S):
        gates = xd[:, t:t + 1] @ w_ih + h @ w_hh + b
        i = jax.nn.sigmoid(gates[:, 0 * H:1 * H])
        f = jax.nn.sigmoid(gates[:, 1 * H:2 * H])
        g = jnp.tanh(gates[:, 2 * H:3 * H])
        o = jax.nn.sigmoid(gates[:, 3 * H:4 * H])
        c = f * c + i * g
        h = o * jnp.tanh(c)
    h = h * mh
    return h @ params["w_lin"] + params["b_lin"]


# ----------------------------------------------------------------------------- #
# Demo
# ----------------------------------------------------------------------------- #
if __name__ == "__main__":
    input_dim, hidden_size, output_dim, drop_rate = 1, 32, 1, 0.1
    batch, seq, n_samples = 2, 8, 8

    root = jax.random.PRNGKey(0)
    k_x, k_params, k_drop = jax.random.split(root, 3)

    x = jax.random.normal(k_x, (batch, seq), jnp.float32)
    params = init_params(k_params, input_dim, hidden_size, output_dim)

    # Draw the dropout masks once so the kernel and the reference see the same ones.
    keep = 1.0 - drop_rate
    nb = n_samples * batch
    k1, k2 = jax.random.split(k_drop)
    mx = jax.random.bernoulli(k1, keep, (nb, seq)).astype(jnp.float32) / keep
    mh = jax.random.bernoulli(k2, keep, (nb, hidden_size)).astype(jnp.float32) / keep

    out = blstm_nmc_forward(x, params, drop_rate, n_samples=n_samples,
                            masks=(mx, mh))
    out = jax.block_until_ready(out)
    assert out.shape == (n_samples, batch, output_dim)

    ref = blstm_nmc_reference(jnp.tile(x, (n_samples, 1)), params, mx, mh)
    ref = ref.reshape(n_samples, batch, output_dim)
    err = float(jnp.max(jnp.abs(out - ref)))
    assert err < 5e-2, f"kernel mismatch: max |diff| = {err}"

    print("KERNEL_OK")
</pallas_src>

<mosaic_0001>
module attributes {stable_mosaic.version = 11 : i64} {
  func.func @blstm_nmc_kernel(%arg0: i32, %arg1: memref<16x8xf32, #tpu.memory_space<vmem>>, %arg2: memref<16x8xf32, #tpu.memory_space<vmem>>, %arg3: memref<16x128xf32, #tpu.memory_space<vmem>>, %arg4: memref<1x512xf32, #tpu.memory_space<vmem>>, %arg5: memref<128x512xbf16, #tpu.memory_space<vmem>>, %arg6: memref<1x512xf32, #tpu.memory_space<vmem>>, %arg7: memref<1x128xf32, #tpu.memory_space<vmem>>, %arg8: memref<1x1xf32, #tpu.memory_space<vmem>>, %arg9: memref<16x1xf32, #tpu.memory_space<vmem>>) attributes {dimension_semantics = [#tpu.dimension_semantics<parallel>], iteration_bounds = array<i64: 1>, scalar_prefetch = 0 : i64, scratch_operands = 0 : i64, tpu.core_type = #tpu.core_type<tc>, window_params = [{transform_indices = @transform_0, window_bounds = array<i64: 16, 8>}, {transform_indices = @transform_1, window_bounds = array<i64: 16, 8>}, {transform_indices = @transform_2, window_bounds = array<i64: 16, 128>}, {pipeline_mode = #tpu.pipeline_mode<synchronous>, transform_indices = @transform_3, window_bounds = array<i64: 1, 512>}, {pipeline_mode = #tpu.pipeline_mode<synchronous>, transform_indices = @transform_4, window_bounds = array<i64: 128, 512>}, {pipeline_mode = #tpu.pipeline_mode<synchronous>, transform_indices = @transform_5, window_bounds = array<i64: 1, 512>}, {pipeline_mode = #tpu.pipeline_mode<synchronous>, transform_indices = @transform_6, window_bounds = array<i64: 1, 128>}, {pipeline_mode = #tpu.pipeline_mode<synchronous>, transform_indices = @transform_7, window_bounds = array<i64: 1, 1>}, {transform_indices = @transform_8, window_bounds = array<i64: 16, 1>}]} {
    %c0 = arith.constant 0 : index
    %c0_0 = arith.constant 0 : index
    %0 = vector.load %arg5[%c0, %c0_0] : memref<128x512xbf16, #tpu.memory_space<vmem>>, vector<128x512xbf16>
    %c0_1 = arith.constant 0 : index
    %c0_2 = arith.constant 0 : index
    %1 = vector.load %arg4[%c0_1, %c0_2] : memref<1x512xf32, #tpu.memory_space<vmem>>, vector<1x512xf32>
    %c0_3 = arith.constant 0 : index
    %c0_4 = arith.constant 0 : index
    %2 = vector.load %arg6[%c0_3, %c0_4] : memref<1x512xf32, #tpu.memory_space<vmem>>, vector<1x512xf32>
    %c0_5 = arith.constant 0 : index
    %c0_6 = arith.constant 0 : index
    %3 = vector.load %arg1[%c0_5, %c0_6] : memref<16x8xf32, #tpu.memory_space<vmem>>, vector<16x8xf32>
    %c0_7 = arith.constant 0 : index
    %c0_8 = arith.constant 0 : index
    %4 = vector.load %arg2[%c0_7, %c0_8] : memref<16x8xf32, #tpu.memory_space<vmem>>, vector<16x8xf32>
    %5 = arith.mulf %3, %4 : vector<16x8xf32>
    %cst = arith.constant 0.000000e+00 : f32
    %6 = vector.broadcast %cst : f32 to vector<16x128xf32>
    %cst_9 = arith.constant 0.000000e+00 : f32
    %7 = vector.broadcast %cst_9 : f32 to vector<16x128xf32>
    %8 = vector.extract_strided_slice %5 {offsets = [0, 0], sizes = [16, 1], strides = [1, 1]} : vector<16x8xf32> to vector<16x1xf32>
    %9 = vector.broadcast %8 : vector<16x1xf32> to vector<16x512xf32>
    %10 = vector.broadcast %1 : vector<1x512xf32> to vector<16x512xf32>
    %11 = arith.mulf %9, %10 : vector<16x512xf32>
    %12 = vector.broadcast %2 : vector<1x512xf32> to vector<16x512xf32>
    %13 = arith.addf %11, %12 : vector<16x512xf32>
    %14 = arith.truncf %6 : vector<16x128xf32> to vector<16x128xbf16>
    %cst_10 = arith.constant dense<0.000000e+00> : vector<16x512xf32>
    %15 = tpu.matmul %14, %0, %cst_10 {dimension_numbers = #tpu.dot_dimension_numbers<[1], [0], [0], [1], [0, 0, 1, 1], [], []>} : vector<16x128xbf16>, vector<128x512xbf16>, vector<16x512xf32> -> vector<16x512xf32>
    %16 = arith.addf %13, %15 : vector<16x512xf32>
    %17 = vector.extract_strided_slice %16 {offsets = [0, 0], sizes = [16, 384], strides = [1, 1]} : vector<16x512xf32> to vector<16x384xf32>
    %18 = arith.negf %17 : vector<16x384xf32>
    %19 = math.exp %18 : vector<16x384xf32>
    %cst_11 = arith.constant 1.000000e+00 : f32
    %20 = vector.broadcast %cst_11 : f32 to vector<16x384xf32>
    %21 = arith.addf %20, %19 : vector<16x384xf32>
    %22 = arith.divf %20, %21 : vector<16x384xf32>
    %23 = vector.extract_strided_slice %22 {offsets = [0, 0], sizes = [16, 128], strides = [1, 1]} : vector<16x384xf32> to vector<16x128xf32>
    %24 = vector.extract_strided_slice %22 {offsets = [0, 128], sizes = [16, 128], strides = [1, 1]} : vector<16x384xf32> to vector<16x128xf32>
    %25 = vector.extract_strided_slice %22 {offsets = [0, 256], sizes = [16, 128], strides = [1, 1]} : vector<16x384xf32> to vector<16x128xf32>
    %26 = vector.extract_strided_slice %16 {offsets = [0, 384], sizes = [16, 128], strides = [1, 1]} : vector<16x512xf32> to vector<16x128xf32>
    %27 = math.tanh %26 : vector<16x128xf32>
    %28 = arith.mulf %24, %7 : vector<16x128xf32>
    %29 = arith.mulf %23, %27 : vector<16x128xf32>
    %30 = arith.addf %28, %29 : vector<16x128xf32>
    %31 = math.tanh %30 : vector<16x128xf32>
    %32 = arith.mulf %25, %31 : vector<16x128xf32>
    %33 = vector.extract_strided_slice %5 {offsets = [0, 1], sizes = [16, 1], strides = [1, 1]} : vector<16x8xf32> to vector<16x1xf32>
    %34 = vector.broadcast %33 : vector<16x1xf32> to vector<16x512xf32>
    %35 = vector.broadcast %1 : vector<1x512xf32> to vector<16x512xf32>
    %36 = arith.mulf %34, %35 : vector<16x512xf32>
    %37 = vector.broadcast %2 : vector<1x512xf32> to vector<16x512xf32>
    %38 = arith.addf %36, %37 : vector<16x512xf32>
    %39 = arith.truncf %32 : vector<16x128xf32> to vector<16x128xbf16>
    %cst_12 = arith.constant dense<0.000000e+00> : vector<16x512xf32>
    %40 = tpu.matmul %39, %0, %cst_12 {dimension_numbers = #tpu.dot_dimension_numbers<[1], [0], [0], [1], [0, 0, 1, 1], [], []>} : vector<16x128xbf16>, vector<128x512xbf16>, vector<16x512xf32> -> vector<16x512xf32>
    %41 = arith.addf %38, %40 : vector<16x512xf32>
    %42 = vector.extract_strided_slice %41 {offsets = [0, 0], sizes = [16, 384], strides = [1, 1]} : vector<16x512xf32> to vector<16x384xf32>
    %43 = arith.negf %42 : vector<16x384xf32>
    %44 = math.exp %43 : vector<16x384xf32>
    %cst_13 = arith.constant 1.000000e+00 : f32
    %45 = vector.broadcast %cst_13 : f32 to vector<16x384xf32>
    %46 = arith.addf %45, %44 : vector<16x384xf32>
    %47 = arith.divf %45, %46 : vector<16x384xf32>
    %48 = vector.extract_strided_slice %47 {offsets = [0, 0], sizes = [16, 128], strides = [1, 1]} : vector<16x384xf32> to vector<16x128xf32>
    %49 = vector.extract_strided_slice %47 {offsets = [0, 128], sizes = [16, 128], strides = [1, 1]} : vector<16x384xf32> to vector<16x128xf32>
    %50 = vector.extract_strided_slice %47 {offsets = [0, 256], sizes = [16, 128], strides = [1, 1]} : vector<16x384xf32> to vector<16x128xf32>
    %51 = vector.extract_strided_slice %41 {offsets = [0, 384], sizes = [16, 128], strides = [1, 1]} : vector<16x512xf32> to vector<16x128xf32>
    %52 = math.tanh %51 : vector<16x128xf32>
    %53 = arith.mulf %49, %30 : vector<16x128xf32>
    %54 = arith.mulf %48, %52 : vector<16x128xf32>
    %55 = arith.addf %53, %54 : vector<16x128xf32>
    %56 = math.tanh %55 : vector<16x128xf32>
    %57 = arith.mulf %50, %56 : vector<16x128xf32>
    %58 = vector.extract_strided_slice %5 {offsets = [0, 2], sizes = [16, 1], strides = [1, 1]} : vector<16x8xf32> to vector<16x1xf32>
    %59 = vector.broadcast %58 : vector<16x1xf32> to vector<16x512xf32>
    %60 = vector.broadcast %1 : vector<1x512xf32> to vector<16x512xf32>
    %61 = arith.mulf %59, %60 : vector<16x512xf32>
    %62 = vector.broadcast %2 : vector<1x512xf32> to vector<16x512xf32>
    %63 = arith.addf %61, %62 : vector<16x512xf32>
    %64 = arith.truncf %57 : vector<16x128xf32> to vector<16x128xbf16>
    %cst_14 = arith.constant dense<0.000000e+00> : vector<16x512xf32>
    %65 = tpu.matmul %64, %0, %cst_14 {dimension_numbers = #tpu.dot_dimension_numbers<[1], [0], [0], [1], [0, 0, 1, 1], [], []>} : vector<16x128xbf16>, vector<128x512xbf16>, vector<16x512xf32> -> vector<16x512xf32>
    %66 = arith.addf %63, %65 : vector<16x512xf32>
    %67 = vector.extract_strided_slice %66 {offsets = [0, 0], sizes = [16, 384], strides = [1, 1]} : vector<16x512xf32> to vector<16x384xf32>
    %68 = arith.negf %67 : vector<16x384xf32>
    %69 = math.exp %68 : vector<16x384xf32>
    %cst_15 = arith.constant 1.000000e+00 : f32
    %70 = vector.broadcast %cst_15 : f32 to vector<16x384xf32>
    %71 = arith.addf %70, %69 : vector<16x384xf32>
    %72 = arith.divf %70, %71 : vector<16x384xf32>
    %73 = vector.extract_strided_slice %72 {offsets = [0, 0], sizes = [16, 128], strides = [1, 1]} : vector<16x384xf32> to vector<16x128xf32>
    %74 = vector.extract_strided_slice %72 {offsets = [0, 128], sizes = [16, 128], strides = [1, 1]} : vector<16x384xf32> to vector<16x128xf32>
    %75 = vector.extract_strided_slice %72 {offsets = [0, 256], sizes = [16, 128], strides = [1, 1]} : vector<16x384xf32> to vector<16x128xf32>
    %76 = vector.extract_strided_slice %66 {offsets = [0, 384], sizes = [16, 128], strides = [1, 1]} : vector<16x512xf32> to vector<16x128xf32>
    %77 = math.tanh %76 : vector<16x128xf32>
    %78 = arith.mulf %74, %55 : vector<16x128xf32>
    %79 = arith.mulf %73, %77 : vector<16x128xf32>
    %80 = arith.addf %78, %79 : vector<16x128xf32>
    %81 = math.tanh %80 : vector<16x128xf32>
    %82 = arith.mulf %75, %81 : vector<16x128xf32>
    %83 = vector.extract_strided_slice %5 {offsets = [0, 3], sizes = [16, 1], strides = [1, 1]} : vector<16x8xf32> to vector<16x1xf32>
    %84 = vector.broadcast %83 : vector<16x1xf32> to vector<16x512xf32>
    %85 = vector.broadcast %1 : vector<1x512xf32> to vector<16x512xf32>
    %86 = arith.mulf %84, %85 : vector<16x512xf32>
    %87 = vector.broadcast %2 : vector<1x512xf32> to vector<16x512xf32>
    %88 = arith.addf %86, %87 : vector<16x512xf32>
    %89 = arith.truncf %82 : vector<16x128xf32> to vector<16x128xbf16>
    %cst_16 = arith.constant dense<0.000000e+00> : vector<16x512xf32>
    %90 = tpu.matmul %89, %0, %cst_16 {dimension_numbers = #tpu.dot_dimension_numbers<[1], [0], [0], [1], [0, 0, 1, 1], [], []>} : vector<16x128xbf16>, vector<128x512xbf16>, vector<16x512xf32> -> vector<16x512xf32>
    %91 = arith.addf %88, %90 : vector<16x512xf32>
    %92 = vector.extract_strided_slice %91 {offsets = [0, 0], sizes = [16, 384], strides = [1, 1]} : vector<16x512xf32> to vector<16x384xf32>
    %93 = arith.negf %92 : vector<16x384xf32>
    %94 = math.exp %93 : vector<16x384xf32>
    %cst_17 = arith.constant 1.000000e+00 : f32
    %95 = vector.broadcast %cst_17 : f32 to vector<16x384xf32>
    %96 = arith.addf %95, %94 : vector<16x384xf32>
    %97 = arith.divf %95, %96 : vector<16x384xf32>
    %98 = vector.extract_strided_slice %97 {offsets = [0, 0], sizes = [16, 128], strides = [1, 1]} : vector<16x384xf32> to vector<16x128xf32>
    %99 = vector.extract_strided_slice %97 {offsets = [0, 128], sizes = [16, 128], strides = [1, 1]} : vector<16x384xf32> to vector<16x128xf32>
    %100 = vector.extract_strided_slice %97 {offsets = [0, 256], sizes = [16, 128], strides = [1, 1]} : vector<16x384xf32> to vector<16x128xf32>
    %101 = vector.extract_strided_slice %91 {offsets = [0, 384], sizes = [16, 128], strides = [1, 1]} : vector<16x512xf32> to vector<16x128xf32>
    %102 = math.tanh %101 : vector<16x128xf32>
    %103 = arith.mulf %99, %80 : vector<16x128xf32>
    %104 = arith.mulf %98, %102 : vector<16x128xf32>
    %105 = arith.addf %103, %104 : vector<16x128xf32>
    %106 = math.tanh %105 : vector<16x128xf32>
    %107 = arith.mulf %100, %106 : vector<16x128xf32>
    %108 = vector.extract_strided_slice %5 {offsets = [0, 4], sizes = [16, 1], strides = [1, 1]} : vector<16x8xf32> to vector<16x1xf32>
    %109 = vector.broadcast %108 : vector<16x1xf32> to vector<16x512xf32>
    %110 = vector.broadcast %1 : vector<1x512xf32> to vector<16x512xf32>
    %111 = arith.mulf %109, %110 : vector<16x512xf32>
    %112 = vector.broadcast %2 : vector<1x512xf32> to vector<16x512xf32>
    %113 = arith.addf %111, %112 : vector<16x512xf32>
    %114 = arith.truncf %107 : vector<16x128xf32> to vector<16x128xbf16>
    %cst_18 = arith.constant dense<0.000000e+00> : vector<16x512xf32>
    %115 = tpu.matmul %114, %0, %cst_18 {dimension_numbers = #tpu.dot_dimension_numbers<[1], [0], [0], [1], [0, 0, 1, 1], [], []>} : vector<16x128xbf16>, vector<128x512xbf16>, vector<16x512xf32> -> vector<16x512xf32>
    %116 = arith.addf %113, %115 : vector<16x512xf32>
    %117 = vector.extract_strided_slice %116 {offsets = [0, 0], sizes = [16, 384], strides = [1, 1]} : vector<16x512xf32> to vector<16x384xf32>
    %118 = arith.negf %117 : vector<16x384xf32>
    %119 = math.exp %118 : vector<16x384xf32>
    %cst_19 = arith.constant 1.000000e+00 : f32
    %120 = vector.broadcast %cst_19 : f32 to vector<16x384xf32>
    %121 = arith.addf %120, %119 : vector<16x384xf32>
    %122 = arith.divf %120, %121 : vector<16x384xf32>
    %123 = vector.extract_strided_slice %122 {offsets = [0, 0], sizes = [16, 128], strides = [1, 1]} : vector<16x384xf32> to vector<16x128xf32>
    %124 = vector.extract_strided_slice %122 {offsets = [0, 128], sizes = [16, 128], strides = [1, 1]} : vector<16x384xf32> to vector<16x128xf32>
    %125 = vector.extract_strided_slice %122 {offsets = [0, 256], sizes = [16, 128], strides = [1, 1]} : vector<16x384xf32> to vector<16x128xf32>
    %126 = vector.extract_strided_slice %116 {offsets = [0, 384], sizes = [16, 128], strides = [1, 1]} : vector<16x512xf32> to vector<16x128xf32>
    %127 = math.tanh %126 : vector<16x128xf32>
    %128 = arith.mulf %124, %105 : vector<16x128xf32>
    %129 = arith.mulf %123, %127 : vector<16x128xf32>
    %130 = arith.addf %128, %129 : vector<16x128xf32>
    %131 = math.tanh %130 : vector<16x128xf32>
    %132 = arith.mulf %125, %131 : vector<16x128xf32>
    %133 = vector.extract_strided_slice %5 {offsets = [0, 5], sizes = [16, 1], strides = [1, 1]} : vector<16x8xf32> to vector<16x1xf32>
    %134 = vector.broadcast %133 : vector<16x1xf32> to vector<16x512xf32>
    %135 = vector.broadcast %1 : vector<1x512xf32> to vector<16x512xf32>
    %136 = arith.mulf %134, %135 : vector<16x512xf32>
    %137 = vector.broadcast %2 : vector<1x512xf32> to vector<16x512xf32>
    %138 = arith.addf %136, %137 : vector<16x512xf32>
    %139 = arith.truncf %132 : vector<16x128xf32> to vector<16x128xbf16>
    %cst_20 = arith.constant dense<0.000000e+00> : vector<16x512xf32>
    %140 = tpu.matmul %139, %0, %cst_20 {dimension_numbers = #tpu.dot_dimension_numbers<[1], [0], [0], [1], [0, 0, 1, 1], [], []>} : vector<16x128xbf16>, vector<128x512xbf16>, vector<16x512xf32> -> vector<16x512xf32>
    %141 = arith.addf %138, %140 : vector<16x512xf32>
    %142 = vector.extract_strided_slice %141 {offsets = [0, 0], sizes = [16, 384], strides = [1, 1]} : vector<16x512xf32> to vector<16x384xf32>
    %143 = arith.negf %142 : vector<16x384xf32>
    %144 = math.exp %143 : vector<16x384xf32>
    %cst_21 = arith.constant 1.000000e+00 : f32
    %145 = vector.broadcast %cst_21 : f32 to vector<16x384xf32>
    %146 = arith.addf %145, %144 : vector<16x384xf32>
    %147 = arith.divf %145, %146 : vector<16x384xf32>
    %148 = vector.extract_strided_slice %147 {offsets = [0, 0], sizes = [16, 128], strides = [1, 1]} : vector<16x384xf32> to vector<16x128xf32>
    %149 = vector.extract_strided_slice %147 {offsets = [0, 128], sizes = [16, 128], strides = [1, 1]} : vector<16x384xf32> to vector<16x128xf32>
    %150 = vector.extract_strided_slice %147 {offsets = [0, 256], sizes = [16, 128], strides = [1, 1]} : vector<16x384xf32> to vector<16x128xf32>
    %151 = vector.extract_strided_slice %141 {offsets = [0, 384], sizes = [16, 128], strides = [1, 1]} : vector<16x512xf32> to vector<16x128xf32>
    %152 = math.tanh %151 : vector<16x128xf32>
    %153 = arith.mulf %149, %130 : vector<16x128xf32>
    %154 = arith.mulf %148, %152 : vector<16x128xf32>
    %155 = arith.addf %153, %154 : vector<16x128xf32>
    %156 = math.tanh %155 : vector<16x128xf32>
    %157 = arith.mulf %150, %156 : vector<16x128xf32>
    %158 = vector.extract_strided_slice %5 {offsets = [0, 6], sizes = [16, 1], strides = [1, 1]} : vector<16x8xf32> to vector<16x1xf32>
    %159 = vector.broadcast %158 : vector<16x1xf32> to vector<16x512xf32>
    %160 = vector.broadcast %1 : vector<1x512xf32> to vector<16x512xf32>
    %161 = arith.mulf %159, %160 : vector<16x512xf32>
    %162 = vector.broadcast %2 : vector<1x512xf32> to vector<16x512xf32>
    %163 = arith.addf %161, %162 : vector<16x512xf32>
    %164 = arith.truncf %157 : vector<16x128xf32> to vector<16x128xbf16>
    %cst_22 = arith.constant dense<0.000000e+00> : vector<16x512xf32>
    %165 = tpu.matmul %164, %0, %cst_22 {dimension_numbers = #tpu.dot_dimension_numbers<[1], [0], [0], [1], [0, 0, 1, 1], [], []>} : vector<16x128xbf16>, vector<128x512xbf16>, vector<16x512xf32> -> vector<16x512xf32>
    %166 = arith.addf %163, %165 : vector<16x512xf32>
    %167 = vector.extract_strided_slice %166 {offsets = [0, 0], sizes = [16, 384], strides = [1, 1]} : vector<16x512xf32> to vector<16x384xf32>
    %168 = arith.negf %167 : vector<16x384xf32>
    %169 = math.exp %168 : vector<16x384xf32>
    %cst_23 = arith.constant 1.000000e+00 : f32
    %170 = vector.broadcast %cst_23 : f32 to vector<16x384xf32>
    %171 = arith.addf %170, %169 : vector<16x384xf32>
    %172 = arith.divf %170, %171 : vector<16x384xf32>
    %173 = vector.extract_strided_slice %172 {offsets = [0, 0], sizes = [16, 128], strides = [1, 1]} : vector<16x384xf32> to vector<16x128xf32>
    %174 = vector.extract_strided_slice %172 {offsets = [0, 128], sizes = [16, 128], strides = [1, 1]} : vector<16x384xf32> to vector<16x128xf32>
    %175 = vector.extract_strided_slice %172 {offsets = [0, 256], sizes = [16, 128], strides = [1, 1]} : vector<16x384xf32> to vector<16x128xf32>
    %176 = vector.extract_strided_slice %166 {offsets = [0, 384], sizes = [16, 128], strides = [1, 1]} : vector<16x512xf32> to vector<16x128xf32>
    %177 = math.tanh %176 : vector<16x128xf32>
    %178 = arith.mulf %174, %155 : vector<16x128xf32>
    %179 = arith.mulf %173, %177 : vector<16x128xf32>
    %180 = arith.addf %178, %179 : vector<16x128xf32>
    %181 = math.tanh %180 : vector<16x128xf32>
    %182 = arith.mulf %175, %181 : vector<16x128xf32>
    %183 = vector.extract_strided_slice %5 {offsets = [0, 7], sizes = [16, 1], strides = [1, 1]} : vector<16x8xf32> to vector<16x1xf32>
    %184 = vector.broadcast %183 : vector<16x1xf32> to vector<16x512xf32>
    %185 = vector.broadcast %1 : vector<1x512xf32> to vector<16x512xf32>
    %186 = arith.mulf %184, %185 : vector<16x512xf32>
    %187 = vector.broadcast %2 : vector<1x512xf32> to vector<16x512xf32>
    %188 = arith.addf %186, %187 : vector<16x512xf32>
    %189 = arith.truncf %182 : vector<16x128xf32> to vector<16x128xbf16>
    %cst_24 = arith.constant dense<0.000000e+00> : vector<16x512xf32>
    %190 = tpu.matmul %189, %0, %cst_24 {dimension_numbers = #tpu.dot_dimension_numbers<[1], [0], [0], [1], [0, 0, 1, 1], [], []>} : vector<16x128xbf16>, vector<128x512xbf16>, vector<16x512xf32> -> vector<16x512xf32>
    %191 = arith.addf %188, %190 : vector<16x512xf32>
    %192 = vector.extract_strided_slice %191 {offsets = [0, 0], sizes = [16, 384], strides = [1, 1]} : vector<16x512xf32> to vector<16x384xf32>
    %193 = arith.negf %192 : vector<16x384xf32>
    %194 = math.exp %193 : vector<16x384xf32>
    %cst_25 = arith.constant 1.000000e+00 : f32
    %195 = vector.broadcast %cst_25 : f32 to vector<16x384xf32>
    %196 = arith.addf %195, %194 : vector<16x384xf32>
    %197 = arith.divf %195, %196 : vector<16x384xf32>
    %198 = vector.extract_strided_slice %197 {offsets = [0, 0], sizes = [16, 128], strides = [1, 1]} : vector<16x384xf32> to vector<16x128xf32>
    %199 = vector.extract_strided_slice %197 {offsets = [0, 128], sizes = [16, 128], strides = [1, 1]} : vector<16x384xf32> to vector<16x128xf32>
    %200 = vector.extract_strided_slice %197 {offsets = [0, 256], sizes = [16, 128], strides = [1, 1]} : vector<16x384xf32> to vector<16x128xf32>
    %201 = vector.extract_strided_slice %191 {offsets = [0, 384], sizes = [16, 128], strides = [1, 1]} : vector<16x512xf32> to vector<16x128xf32>
    %202 = math.tanh %201 : vector<16x128xf32>
    %203 = arith.mulf %199, %180 : vector<16x128xf32>
    %204 = arith.mulf %198, %202 : vector<16x128xf32>
    %205 = arith.addf %203, %204 : vector<16x128xf32>
    %206 = math.tanh %205 : vector<16x128xf32>
    %207 = arith.mulf %200, %206 : vector<16x128xf32>
    %c0_26 = arith.constant 0 : index
    %c0_27 = arith.constant 0 : index
    %208 = vector.load %arg3[%c0_26, %c0_27] : memref<16x128xf32, #tpu.memory_space<vmem>>, vector<16x128xf32>
    %209 = arith.mulf %207, %208 : vector<16x128xf32>
    %c0_28 = arith.constant 0 : index
    %c0_29 = arith.constant 0 : index
    %210 = vector.load %arg7[%c0_28, %c0_29] : memref<1x128xf32, #tpu.memory_space<vmem>>, vector<1x128xf32>
    %211 = vector.broadcast %210 : vector<1x128xf32> to vector<16x128xf32>
    %212 = arith.mulf %209, %211 : vector<16x128xf32>
    %cst_30 = arith.constant dense<0.000000e+00> : vector<16xf32>
    %213 = vector.multi_reduction <add>, %212, %cst_30 [1] : vector<16x128xf32> to vector<16xf32>
    %214 = vector.shape_cast %213 : vector<16xf32> to vector<16x1xf32>
    %c0_31 = arith.constant 0 : index
    %c0_32 = arith.constant 0 : index
    %215 = vector.load %arg8[%c0_31, %c0_32] : memref<1x1xf32, #tpu.memory_space<vmem>>, vector<1x1xf32>
    %216 = vector.broadcast %215 : vector<1x1xf32> to vector<16x1xf32>
    %217 = arith.addf %214, %216 : vector<16x1xf32>
    %c0_33 = arith.constant 0 : index
    %c0_34 = arith.constant 0 : index
    %218 = vector.load %arg9[%c0_33, %c0_34] : memref<16x1xf32, #tpu.memory_space<vmem>>, vector<16x1xf32>
    tpu.vector_store %arg9[%c0_33, %c0_34], %217 {strides = array<i32>} : memref<16x1xf32, #tpu.memory_space<vmem>>, vector<16x1xf32>,
    return
  }
  func.func @transform_0(%arg0: i32) -> (i32, i32) {
    %c0_i32 = arith.constant 0 : i32
    %c0_i32_0 = arith.constant 0 : i32
    return %arg0, %c0_i32 : i32, i32
  }
  func.func @transform_1(%arg0: i32) -> (i32, i32) {
    %c0_i32 = arith.constant 0 : i32
    %c0_i32_0 = arith.constant 0 : i32
    return %arg0, %c0_i32 : i32, i32
  }
  func.func @transform_2(%arg0: i32) -> (i32, i32) {
    %c0_i32 = arith.constant 0 : i32
    %c0_i32_0 = arith.constant 0 : i32
    return %arg0, %c0_i32 : i32, i32
  }
  func.func @transform_3(%arg0: i32) -> (i32, i32) {
    %c0_i32 = arith.constant 0 : i32
    %c0_i32_0 = arith.constant 0 : i32
    %c0_i32_1 = arith.constant 0 : i32
    return %c0_i32, %c0_i32_0 : i32, i32
  }
  func.func @transform_4(%arg0: i32) -> (i32, i32) {
    %c0_i32 = arith.constant 0 : i32
    %c0_i32_0 = arith.constant 0 : i32
    %c0_i32_1 = arith.constant 0 : i32
    return %c0_i32, %c0_i32_0 : i32, i32
  }
  func.func @transform_5(%arg0: i32) -> (i32, i32) {
    %c0_i32 = arith.constant 0 : i32
    %c0_i32_0 = arith.constant 0 : i32
    %c0_i32_1 = arith.constant 0 : i32
    return %c0_i32, %c0_i32_0 : i32, i32
  }
  func.func @transform_6(%arg0: i32) -> (i32, i32) {
    %c0_i32 = arith.constant 0 : i32
    %c0_i32_0 = arith.constant 0 : i32
    %c0_i32_1 = arith.constant 0 : i32
    return %c0_i32, %c0_i32_0 : i32, i32
  }
  func.func @transform_7(%arg0: i32) -> (i32, i32) {
    %c0_i32 = arith.constant 0 : i32
    %c0_i32_0 = arith.constant 0 : i32
    %c0_i32_1 = arith.constant 0 : i32
    return %c0_i32, %c0_i32_0 : i32, i32
  }
  func.func @transform_8(%arg0: i32) -> (i32, i32) {
    %c0_i32 = arith.constant 0 : i32
    %c0_i32_0 = arith.constant 0 : i32
    return %arg0, %c0_i32 : i32, i32
  }
}

</mosaic_0001>

<llo_original>
// kernel: tpu_custom_call.1
$region0: #{tpu_custom_call.1}
  #allocation0 [shape = 'u32[]', space=smem, size = 0x4, offset = 0x4, fixed_abs, tag = 'smem constant byte address 0x4 - core index']
  #allocation1 [shape = 'u32[144,128]{1,0:T(1,128)}', space=vmem, size = 0x12000, scoped, tag = 'internal scratch']
  #allocation2 [shape = 'f32[1,1]{1,0:T(1,128)S(1)}', space=vmem, size = 0x200, scoped, tag = 'scoped memory for tpu_custom_call.1']
  %s0 = inlined_call_operand.vmem [shape: f32[16,8], index: 0, kind: input, shape index: {}]
  %s1 = inlined_call_operand.vmem [shape: f32[16,8], index: 1, kind: input, shape index: {}]
  %s2 = inlined_call_operand.vmem [shape: f32[16,128], index: 2, kind: input, shape index: {}]
  %s3 = inlined_call_operand.vmem [shape: f32[1,512], index: 3, kind: input, shape index: {}]
  %s4 = inlined_call_operand.hbm [shape: bf16[128,512], index: 4, kind: input, shape index: {}]
  %s5 = inlined_call_operand.vmem [shape: f32[1,512], index: 5, kind: input, shape index: {}]
  %s6 = inlined_call_operand.vmem [shape: f32[1,128], index: 6, kind: input, shape index: {}]
  %s7 = inlined_call_operand.<no memory space> [shape: f32[1,1], index: 7, kind: input, shape index: {}]
  %s8 = inlined_call_operand.vmem [shape: f32[16,1], index: 8, kind: output, shape index: {}]
  %s9 = sld [smem:[#allocation0]]
  $region46: #{tpu_custom_call.1} parent=0
    _
  %s11 = ssub.s32 1, %s9
  %s12 = scalar_select 0, %s11, %s9
  %v13 = vstv %s7
  %14 = vst [vmem:[#allocation2] sm:$0x1] %v13
  $region1: #{tpu_custom_call.1} parent=0
    #allocation3 [shape = 'u8[131072]{0}', space=vmem, size = 0x20000, scoped, tag = 'input window, operand 4, single buffered']
    #allocation4 [shape = 's32[1]{0}', space=sflag, size = 0x4, scoped, tag = 'scoped memory for tpu_custom_call.1']
    %15 = vsyncpa [#allocation4], 0
    // Predicated region
    $region2: #{tpu_custom_call.1} parent=1 // pred_check
      _
    $region3: #{tpu_custom_call.1} parent=1 // pred_check_branch
      %17 = sbr.rel (0) target = $region5
    $region4: #{tpu_custom_call.1} parent=1 // pred_region
      _
    $region5: #{tpu_custom_call.1} parent=1 // pred_fallthru
      _
    // Predicated region
    $region6: #{tpu_custom_call.1} parent=1 // pred_check
      _
    $region7: #{tpu_custom_call.1} parent=1 // pred_check_branch
      %19 = sbr.rel (0) target = $region9
    $region8: #{tpu_custom_call.1} parent=1 // pred_region
      _
    $region9: #{tpu_custom_call.1} parent=1 // pred_fallthru
      _
    // Predicated region
    $region10: #{tpu_custom_call.1} parent=1 // pred_check
      _
    $region11: #{tpu_custom_call.1} parent=1 // pred_check_branch
      %21 = sbr.rel (0) target = $region13
    $region12: #{tpu_custom_call.1} parent=1 // pred_region
      _
    $region13: #{tpu_custom_call.1} parent=1 // pred_fallthru
      _
    // Predicated region
    $region14: #{tpu_custom_call.1} parent=1 // pred_check
      _
    $region15: #{tpu_custom_call.1} parent=1 // pred_check_branch
      %23 = sbr.rel (0) target = $region17
    $region16: #{tpu_custom_call.1} parent=1 // pred_region
      _
    $region17: #{tpu_custom_call.1} parent=1 // pred_fallthru
      _
    // Predicated region
    $region18: #{tpu_custom_call.1} parent=1 // pred_check
      _
    $region19: #{tpu_custom_call.1} parent=1 // pred_check_branch
      %25 = sbr.rel (0) target = $region21
    $region20: #{tpu_custom_call.1} parent=1 // pred_region
      %s27 = ssub.s32 4096, 4096
      %28 = vsyncadd [#allocation4], %s27
      %s29 = sshll.u32 [#allocation3], 4
      %s30 = int_to_ptr.vmem [resolvable:$true] %s29
      %35 = dma.hbm_to_vmem [thread:$0]  %s4, 4096, %s30, [#allocation4], 256, 256, 16
    $region21: #{tpu_custom_call.1} parent=1 // pred_fallthru
      _
    // Predicated region
    $region22: #{tpu_custom_call.1} parent=1 // pred_check
      _
    $region23: #{tpu_custom_call.1} parent=1 // pred_check_branch
      %37 = sbr.rel (0) target = $region25
    $region24: #{tpu_custom_call.1} parent=1 // pred_region
      _
    $region25: #{tpu_custom_call.1} parent=1 // pred_fallthru
      _
    // Predicated region
    $region26: #{tpu_custom_call.1} parent=1 // pred_check
      _
    $region27: #{tpu_custom_call.1} parent=1 // pred_check_branch
      %39 = sbr.rel (0) target = $region29
    $region28: #{tpu_custom_call.1} parent=1 // pred_region
      _
    $region29: #{tpu_custom_call.1} parent=1 // pred_fallthru
      _
    // Predicated region
    $region30: #{tpu_custom_call.1} parent=1 // pred_check
      _
    $region31: #{tpu_custom_call.1} parent=1 // pred_check_branch
      %41 = sbr.rel (0) target = $region33
    $region32: #{tpu_custom_call.1} parent=1 // pred_region
      _
    $region33: #{tpu_custom_call.1} parent=1 // pred_fallthru
      _
    // Predicated region
    $region34: #{tpu_custom_call.1} parent=1 // pred_check
      _
    $region35: #{tpu_custom_call.1} parent=1 // pred_check_branch
      %43 = sbr.rel (0) target = $region37
    $region36: #{tpu_custom_call.1} parent=1 // pred_region
      %44 = dma.done [#allocation4], 4096
    $region37: #{tpu_custom_call.1} parent=1 // pred_fallthru
      _
    %v46 = vld [vmem:[#allocation3] sm:$0xff]
    %v47 = vld [vmem:[#allocation3 + $0x8] sm:$0xff]
    %v48 = vld [vmem:[#allocation3 + $0x10] sm:$0xff]
    %v49 = vld [vmem:[#allocation3 + $0x18] sm:$0xff]
    %v50 = vld [vmem:[#allocation3 + $0x20] sm:$0xff]
    %v51 = vld [vmem:[#allocation3 + $0x28] sm:$0xff]
    %v52 = vld [vmem:[#allocation3 + $0x30] sm:$0xff]
    %v53 = vld [vmem:[#allocation3 + $0x38] sm:$0xff]
    %v54 = vld [vmem:[#allocation3 + $0x40] sm:$0xff]
    %v55 = vld [vmem:[#allocation3 + $0x48] sm:$0xff]
    %v56 = vld [vmem:[#allocation3 + $0x50] sm:$0xff]
    %v57 = vld [vmem:[#allocation3 + $0x58] sm:$0xff]
    %v58 = vld [vmem:[#allocation3 + $0x60] sm:$0xff]
    %v59 = vld [vmem:[#allocation3 + $0x68] sm:$0xff]
    %v60 = vld [vmem:[#allocation3 + $0x70] sm:$0xff]
    %v61 = vld [vmem:[#allocation3 + $0x78] sm:$0xff]
    %v62 = vld [vmem:[#allocation3 + $0x80] sm:$0xff]
    %v63 = vld [vmem:[#allocation3 + $0x88] sm:$0xff]
    %v64 = vld [vmem:[#allocation3 + $0x90] sm:$0xff]
    %v65 = vld [vmem:[#allocation3 + $0x98] sm:$0xff]
    %v66 = vld [vmem:[#allocation3 + $0xa0] sm:$0xff]
    %v67 = vld [vmem:[#allocation3 + $0xa8] sm:$0xff]
    %v68 = vld [vmem:[#allocation3 + $0xb0] sm:$0xff]
    %v69 = vld [vmem:[#allocation3 + $0xb8] sm:$0xff]
    %v70 = vld [vmem:[#allocation3 + $0xc0] sm:$0xff]
    %v71 = vld [vmem:[#allocation3 + $0xc8] sm:$0xff]
    %v72 = vld [vmem:[#allocation3 + $0xd0] sm:$0xff]
    %v73 = vld [vmem:[#allocation3 + $0xd8] sm:$0xff]
    %v74 = vld [vmem:[#allocation3 + $0xe0] sm:$0xff]
    %v75 = vld [vmem:[#allocation3 + $0xe8] sm:$0xff]
    %v76 = vld [vmem:[#allocation3 + $0xf0] sm:$0xff]
    %v77 = vld [vmem:[#allocation3 + $0xf8] sm:$0xff]
    %v78 = vld [vmem:[%s3] sm:$0xf]
    %v79 = vld [vmem:[%s5] sm:$0xf]
    %v80 = vld [vmem:[%s0] sm:$0xff]
    %v81 = vld [vmem:[%s0 + $0x8] sm:$0xff]
    %v82 = vld [vmem:[%s1] sm:$0xff]
    %v83 = vld [vmem:[%s1 + $0x8] sm:$0xff]
    %v84 = vmul.f32 %v80, %v82
    %v85 = vmul.f32 %v81, %v83
    %87 = vset.pattern.permute.xlu0 0
    %88 = vperm.xlu0 %87, %v84
    %v89 = vpop.permute.xlu0 %88
    %92 = vset.pattern.permute.xlu0 0
    %93 = vperm.xlu0 %92, %v85
    %v94 = vpop.permute.xlu0 %93
    %v97 = vlaneseq
    %v98 = vshrl.u32 %v97, 7
    %v99 = vsub.s32 0, %v98
    %v100 = vrot.slane %v78, %v99
    %v101 = vlaneseq
    %v102 = vshrl.u32 %v101, 7
    %v103 = vsub.s32 1, %v102
    %v104 = vrot.slane %v78, %v103
    %v105 = vlaneseq
    %v106 = vshrl.u32 %v105, 7
    %v107 = vsub.s32 2, %v106
    %v108 = vrot.slane %v78, %v107
    %v109 = vlaneseq
    %v110 = vshrl.u32 %v109, 7
    %v111 = vsub.s32 3, %v110
    %v112 = vrot.slane %v78, %v111
    %v117 = vmul.f32 %v89, %v100
    %v118 = vmul.f32 %v89, %v104
    %v119 = vmul.f32 %v89, %v108
    %v120 = vmul.f32 %v89, %v112
    %v121 = vmul.f32 %v94, %v100
    %v122 = vmul.f32 %v94, %v104
    %v123 = vmul.f32 %v94, %v108
    %v124 = vmul.f32 %v94, %v112
    %v126 = vlaneseq
    %v127 = vshrl.u32 %v126, 7
    %v128 = vsub.s32 0, %v127
    %v129 = vrot.slane %v79, %v128
    %v130 = vlaneseq
    %v131 = vshrl.u32 %v130, 7
    %v132 = vsub.s32 1, %v131
    %v133 = vrot.slane %v79, %v132
    %v134 = vlaneseq
    %v135 = vshrl.u32 %v134, 7
    %v136 = vsub.s32 2, %v135
    %v137 = vrot.slane %v79, %v136
    %v138 = vlaneseq
    %v139 = vshrl.u32 %v138, 7
    %v140 = vsub.s32 3, %v139
    %v141 = vrot.slane %v79, %v140
    %v146 = vadd.f32 %v117, %v129
    %v147 = vadd.f32 %v118, %v133
    %v148 = vadd.f32 %v119, %v137
    %v149 = vadd.f32 %v120, %v141
    %v150 = vadd.f32 %v121, %v129
    %v151 = vadd.f32 %v122, %v133
    %v152 = vadd.f32 %v123, %v137
    %v153 = vadd.f32 %v124, %v141
    %v186 = vunpack.c.l.b16 %v46
    %v187 = vunpack.c.h.b16 %v46
    %v188 = vunpack.c.l.b16 %v47
    %v189 = vunpack.c.h.b16 %v47
    %v190 = vunpack.c.l.b16 %v48
    %v191 = vunpack.c.h.b16 %v48
    %v192 = vunpack.c.l.b16 %v49
    %v193 = vunpack.c.h.b16 %v49
    %v194 = vunpack.c.l.b16 %v50
    %v195 = vunpack.c.h.b16 %v50
    %v196 = vunpack.c.l.b16 %v51
    %v197 = vunpack.c.h.b16 %v51
    %v198 = vunpack.c.l.b16 %v52
    %v199 = vunpack.c.h.b16 %v52
    %v200 = vunpack.c.l.b16 %v53
    %v201 = vunpack.c.h.b16 %v53
    %v202 = vunpack.c.l.b16 %v54
    %v203 = vunpack.c.h.b16 %v54
    %v204 = vunpack.c.l.b16 %v55
    %v205 = vunpack.c.h.b16 %v55
    %v206 = vunpack.c.l.b16 %v56
    %v207 = vunpack.c.h.b16 %v56
    %v208 = vunpack.c.l.b16 %v57
    %v209 = vunpack.c.h.b16 %v57
    %v210 = vunpack.c.l.b16 %v58
    %v211 = vunpack.c.h.b16 %v58
    %v212 = vunpack.c.l.b16 %v59
    %v213 = vunpack.c.h.b16 %v59
    %v214 = vunpack.c.l.b16 %v60
    %v215 = vunpack.c.h.b16 %v60
    %v216 = vunpack.c.l.b16 %v61
    %v217 = vunpack.c.h.b16 %v61
    %v218 = vunpack.c.l.b16 %v62
    %v219 = vunpack.c.h.b16 %v62
    %v220 = vunpack.c.l.b16 %v63
    %v221 = vunpack.c.h.b16 %v63
    %v222 = vunpack.c.l.b16 %v64
    %v223 = vunpack.c.h.b16 %v64
    %v224 = vunpack.c.l.b16 %v65
    %v225 = vunpack.c.h.b16 %v65
    %v226 = vunpack.c.l.b16 %v66
    %v227 = vunpack.c.h.b16 %v66
    %v228 = vunpack.c.l.b16 %v67
    %v229 = vunpack.c.h.b16 %v67
    %v230 = vunpack.c.l.b16 %v68
    %v231 = vunpack.c.h.b16 %v68
    %v232 = vunpack.c.l.b16 %v69
    %v233 = vunpack.c.h.b16 %v69
    %v234 = vunpack.c.l.b16 %v70
    %v235 = vunpack.c.h.b16 %v70
    %v236 = vunpack.c.l.b16 %v71
    %v237 = vunpack.c.h.b16 %v71
    %v238 = vunpack.c.l.b16 %v72
    %v239 = vunpack.c.h.b16 %v72
    %v240 = vunpack.c.l.b16 %v73
    %v241 = vunpack.c.h.b16 %v73
    %v242 = vunpack.c.l.b16 %v74
    %v243 = vunpack.c.h.b16 %v74
    %v244 = vunpack.c.l.b16 %v75
    %v245 = vunpack.c.h.b16 %v75
    %v246 = vunpack.c.l.b16 %v76
    %v247 = vunpack.c.h.b16 %v76
    %v248 = vunpack.c.l.b16 %v77
    %v249 = vunpack.c.h.b16 %v77
    %v250 = vpack.c.b16 %v190, %v186
    %v251 = vpack.c.b16 %v191, %v187
    %v252 = vpack.c.b16 %v192, %v188
    %v253 = vpack.c.b16 %v193, %v189
    %v254 = vpack.c.b16 %v198, %v194
    %v255 = vpack.c.b16 %v199, %v195
    %v256 = vpack.c.b16 %v200, %v196
    %v257 = vpack.c.b16 %v201, %v197
    %v258 = vpack.c.b16 %v206, %v202
    %v259 = vpack.c.b16 %v207, %v203
    %v260 = vpack.c.b16 %v208, %v204
    %v261 = vpack.c.b16 %v209, %v205
    %v262 = vpack.c.b16 %v214, %v210
    %v263 = vpack.c.b16 %v215, %v211
    %v264 = vpack.c.b16 %v216, %v212
    %v265 = vpack.c.b16 %v217, %v213
    %v266 = vpack.c.b16 %v222, %v218
    %v267 = vpack.c.b16 %v223, %v219
    %v268 = vpack.c.b16 %v224, %v220
    %v269 = vpack.c.b16 %v225, %v221
    %v270 = vpack.c.b16 %v230, %v226
    %v271 = vpack.c.b16 %v231, %v227
    %v272 = vpack.c.b16 %v232, %v228
    %v273 = vpack.c.b16 %v233, %v229
    %v274 = vpack.c.b16 %v238, %v234
    %v275 = vpack.c.b16 %v239, %v235
    %v276 = vpack.c.b16 %v240, %v236
    %v277 = vpack.c.b16 %v241, %v237
    %v278 = vpack.c.b16 %v246, %v242
    %v279 = vpack.c.b16 %v247, %v243
    %v280 = vpack.c.b16 %v248, %v244
    %v281 = vpack.c.b16 %v249, %v245
    %314 = vmatprep.subr.bf16.mxu0 %v279
    %315 = vmatpush1.bf16.msra.mxu0 %v278
    %316 = vmatprep.subr.bf16.mxu0 %v275
    %317 = vmatpush1.bf16.msra.mxu0 %v274
    %318 = vmatprep.subr.bf16.mxu0 %v271
    %319 = vmatpush1.bf16.msra.mxu0 %v270
    %320 = vmatprep.subr.bf16.mxu0 %v267
    %321 = vmatpush1.bf16.msra.mxu0 %v266
    %322 = vmatprep.subr.bf16.mxu0 %v263
    %323 = vmatpush1.bf16.msra.mxu0 %v262
    %324 = vmatprep.subr.bf16.mxu0 %v259
    %325 = vmatpush1.bf16.msra.mxu0 %v258
    %326 = vmatprep.subr.bf16.mxu0 %v255
    %327 = vmatpush1.bf16.msra.mxu0 %v254
    %328 = vmatprep.subr.bf16.mxu0 %v251
    %329 = vmatpush1.bf16.msra.mxu0 %v250
    %330 = vmatprep.subr.bf16.mxu0 0
    %331 = vmatpush2.bf16.msra.mxu0 0
    %332 = vmatprep.subr.bf16.mxu0 0
    %333 = vmatpush2.bf16.msra.mxu0 0
    %334 = vmatprep.subr.bf16.mxu0 0
    %335 = vmatpush2.bf16.msra.mxu0 0
    %336 = vmatprep.subr.bf16.mxu0 0
    %337 = vmatpush2.bf16.msra.mxu0 0
    %338 = vmatprep.subr.bf16.mxu0 0
    %339 = vmatpush2.bf16.msra.mxu0 0
    %340 = vmatprep.subr.bf16.mxu0 0
    %341 = vmatpush2.bf16.msra.mxu0 0
    %342 = vmatprep.subr.bf16.mxu0 0
    %343 = vmatpush2.bf16.msra.mxu0 0
    %344 = vmatprep.subr.bf16.mxu0 0
    %345 = vmatpush2.bf16.msra.mxu0 0
    %346 = vmatprep.mubr.bf16.mxu0 0
    %347 = vmatmul.mubr.bf16.gmra.mxu0 0
    %v348 = vpop.f32.mrf.mxu0
    %v349 = vadd.f32 0.0, %v348
    %v350 = vpop.f32.mrf.mxu0
    %v351 = vadd.f32 0.0, %v350
    %v352 = vpop.f32.mrf.mxu0
    %v353 = vadd.f32 0.0, %v352
    %v354 = vpop.f32.mrf.mxu0
    %v355 = vadd.f32 0.0, %v354
    %356 = vdwg.mxu0
    %357 = vmatprep.subr.bf16.mxu0 %v281
    %358 = vmatpush1.bf16.msra.mxu0 %v280
    %359 = vmatprep.subr.bf16.mxu0 %v277
    %360 = vmatpush1.bf16.msra.mxu0 %v276
    %361 = vmatprep.subr.bf16.mxu0 %v273
    %362 = vmatpush1.bf16.msra.mxu0 %v272
    %363 = vmatprep.subr.bf16.mxu0 %v269
    %364 = vmatpush1.bf16.msra.mxu0 %v268
    %365 = vmatprep.subr.bf16.mxu0 %v265
    %366 = vmatpush1.bf16.msra.mxu0 %v264
    %367 = vmatprep.subr.bf16.mxu0 %v261
    %368 = vmatpush1.bf16.msra.mxu0 %v260
    %369 = vmatprep.subr.bf16.mxu0 %v257
    %370 = vmatpush1.bf16.msra.mxu0 %v256
    %371 = vmatprep.subr.bf16.mxu0 %v253
    %372 = vmatpush1.bf16.msra.mxu0 %v252
    %373 = vmatprep.subr.bf16.mxu0 0
    %374 = vmatpush2.bf16.msra.mxu0 0
    %375 = vmatprep.subr.bf16.mxu0 0
    %376 = vmatpush2.bf16.msra.mxu0 0
    %377 = vmatprep.subr.bf16.mxu0 0
    %378 = vmatpush2.bf16.msra.mxu0 0
    %379 = vmatprep.subr.bf16.mxu0 0
    %380 = vmatpush2.bf16.msra.mxu0 0
    %381 = vmatprep.subr.bf16.mxu0 0
    %382 = vmatpush2.bf16.msra.mxu0 0
    %383 = vmatprep.subr.bf16.mxu0 0
    %384 = vmatpush2.bf16.msra.mxu0 0
    %385 = vmatprep.subr.bf16.mxu0 0
    %386 = vmatpush2.bf16.msra.mxu0 0
    %387 = vmatprep.subr.bf16.mxu0 0
    %388 = vmatpush2.bf16.msra.mxu0 0
    %389 = vmatprep.mubr.bf16.mxu0 0
    %390 = vmatmul.mubr.bf16.gmra.mxu0 0
    %v391 = vpop.f32.mrf.mxu0
    %v392 = vadd.f32 0.0, %v391
    %v393 = vpop.f32.mrf.mxu0
    %v394 = vadd.f32 0.0, %v393
    %v395 = vpop.f32.mrf.mxu0
    %v396 = vadd.f32 0.0, %v395
    %v397 = vpop.f32.mrf.mxu0
    %v398 = vadd.f32 0.0, %v397
    %399 = vdwg.mxu0
    %v400 = vadd.f32 %v146, %v349
    %v401 = vadd.f32 %v147, %v351
    %v402 = vadd.f32 %v148, %v392
    %v403 = vadd.f32 %v149, %v394
    %v404 = vadd.f32 %v150, %v353
    %v405 = vadd.f32 %v151, %v355
    %v406 = vadd.f32 %v152, %v396
    %v407 = vadd.f32 %v153, %v398
    %v408 = vxor.u32 %v400, 2147483648
    %v409 = vxor.u32 %v401, 2147483648
    %v410 = vxor.u32 %v402, 2147483648
    %v411 = vxor.u32 %v404, 2147483648
    %v412 = vxor.u32 %v405, 2147483648
    %v413 = vxor.u32 %v406, 2147483648
    %v414 = vmul.f32 %v408, 1.442695
    %v415 = vpow.pop %v414
    %v416 = vmul.f32 %v409, 1.442695
    %v417 = vpow.pop %v416
    %v418 = vmul.f32 %v410, 1.442695
    %v419 = vpow.pop %v418
    %v420 = vmul.f32 %v411, 1.442695
    %v421 = vpow.pop %v420
    %v422 = vmul.f32 %v412, 1.442695
    %v423 = vpow.pop %v422
    %v424 = vmul.f32 %v413, 1.442695
    %v425 = vpow.pop %v424
    %v426 = vadd.f32 %v415, 1.0
    %v427 = vadd.f32 %v417, 1.0
    %v428 = vadd.f32 %v419, 1.0
    %v429 = vadd.f32 %v421, 1.0
    %v430 = vadd.f32 %v423, 1.0
    %v431 = vadd.f32 %v425, 1.0
    %v432 = vrcp.pop %v426
    %v433 = vmul.f32 1.0, %v432
    %v434 = vrcp.pop %v427
    %v435 = vmul.f32 1.0, %v434
    %v436 = vrcp.pop %v428
    %v437 = vmul.f32 1.0, %v436
    %v438 = vrcp.pop %v429
    %v439 = vmul.f32 1.0, %v438
    %v440 = vrcp.pop %v430
    %v441 = vmul.f32 1.0, %v440
    %v442 = vrcp.pop %v431
    %v443 = vmul.f32 1.0, %v442
    %v444 = vtanh.pop %v403
    %v445 = vtanh.pop %v407
    %v446 = vmul.f32 %v435, 0.0
    %v447 = vmul.f32 %v441, 0.0
    %v448 = vmul.f32 %v433, %v444
    %v449 = vmul.f32 %v439, %v445
    %v450 = vadd.f32 %v446, %v448
    %v451 = vadd.f32 %v447, %v449
    %v452 = vtanh.pop %v450
    %v453 = vtanh.pop %v451
    %v454 = vmul.f32 %v437, %v452
    %v455 = vmul.f32 %v443, %v453
    %456 = vset.pattern.permute.xlu0 1
    %457 = vperm.xlu0 %456, %v84
    %v458 = vpop.permute.xlu0 %457
    %460 = vset.pattern.permute.xlu0 1
    %461 = vperm.xlu0 %460, %v85
    %v462 = vpop.permute.xlu0 %461
    %v464 = vmul.f32 %v458, %v100
    %v465 = vmul.f32 %v458, %v104
    %v466 = vmul.f32 %v458, %v108
    %v467 = vmul.f32 %v458, %v112
    %v468 = vmul.f32 %v462, %v100
    %v469 = vmul.f32 %v462, %v104
    %v470 = vmul.f32 %v462, %v108
    %v471 = vmul.f32 %v462, %v112
    %v472 = vadd.f32 %v464, %v129
    %v473 = vadd.f32 %v465, %v133
    %v474 = vadd.f32 %v466, %v137
    %v475 = vadd.f32 %v467, %v141
    %v476 = vadd.f32 %v468, %v129
    %v477 = vadd.f32 %v469, %v133
    %v478 = vadd.f32 %v470, %v137
    %v479 = vadd.f32 %v471, %v141
    %v480 = vpack.c.bf16 %v455, %v454
    %481 = vmatprep.subr.bf16.mxu0 %v279
    %482 = vmatpush1.bf16.msra.mxu0 %v278
    %483 = vmatprep.subr.bf16.mxu0 %v275
    %484 = vmatpush1.bf16.msra.mxu0 %v274
    %485 = vmatprep.subr.bf16.mxu0 %v271
    %486 = vmatpush1.bf16.msra.mxu0 %v270
    %487 = vmatprep.subr.bf16.mxu0 %v267
    %488 = vmatpush1.bf16.msra.mxu0 %v266
    %489 = vmatprep.subr.bf16.mxu0 %v263
    %490 = vmatpush1.bf16.msra.mxu0 %v262
    %491 = vmatprep.subr.bf16.mxu0 %v259
    %492 = vmatpush1.bf16.msra.mxu0 %v258
    %493 = vmatprep.subr.bf16.mxu0 %v255
    %494 = vmatpush1.bf16.msra.mxu0 %v254
    %495 = vmatprep.subr.bf16.mxu0 %v251
    %496 = vmatpush1.bf16.msra.mxu0 %v250
    %497 = vmatprep.subr.bf16.mxu0 0
    %498 = vmatpush2.bf16.msra.mxu0 0
    %499 = vmatprep.subr.bf16.mxu0 0
    %500 = vmatpush2.bf16.msra.mxu0 0
    %501 = vmatprep.subr.bf16.mxu0 0
    %502 = vmatpush2.bf16.msra.mxu0 0
    %503 = vmatprep.subr.bf16.mxu0 0
    %504 = vmatpush2.bf16.msra.mxu0 0
    %505 = vmatprep.subr.bf16.mxu0 0
    %506 = vmatpush2.bf16.msra.mxu0 0
    %507 = vmatprep.subr.bf16.mxu0 0
    %508 = vmatpush2.bf16.msra.mxu0 0
    %509 = vmatprep.subr.bf16.mxu0 0
    %510 = vmatpush2.bf16.msra.mxu0 0
    %511 = vmatprep.subr.bf16.mxu0 0
    %512 = vmatpush2.bf16.msra.mxu0 0
    %513 = vmatprep.mubr.bf16.mxu0 0
    %514 = vmatmul.mubr.bf16.gmra.mxu0 %v480
    %v515 = vpop.f32.mrf.mxu0
    %v516 = vadd.f32 0.0, %v515
    %v517 = vpop.f32.mrf.mxu0
    %v518 = vadd.f32 0.0, %v517
    %v519 = vpop.f32.mrf.mxu0
    %v520 = vadd.f32 0.0, %v519
    %v521 = vpop.f32.mrf.mxu0
    %v522 = vadd.f32 0.0, %v521
    %523 = vdwg.mxu0
    %524 = vmatprep.subr.bf16.mxu0 %v281
    %525 = vmatpush1.bf16.msra.mxu0 %v280
    %526 = vmatprep.subr.bf16.mxu0 %v277
    %527 = vmatpush1.bf16.msra.mxu0 %v276
    %528 = vmatprep.subr.bf16.mxu0 %v273
    %529 = vmatpush1.bf16.msra.mxu0 %v272
    %530 = vmatprep.subr.bf16.mxu0 %v269
    %531 = vmatpush1.bf16.msra.mxu0 %v268
    %532 = vmatprep.subr.bf16.mxu0 %v265
    %533 = vmatpush1.bf16.msra.mxu0 %v264
    %534 = vmatprep.subr.bf16.mxu0 %v261
    %535 = vmatpush1.bf16.msra.mxu0 %v260
    %536 = vmatprep.subr.bf16.mxu0 %v257
    %537 = vmatpush1.bf16.msra.mxu0 %v256
    %538 = vmatprep.subr.bf16.mxu0 %v253
    %539 = vmatpush1.bf16.msra.mxu0 %v252
    %540 = vmatprep.subr.bf16.mxu0 0
    %541 = vmatpush2.bf16.msra.mxu0 0
    %542 = vmatprep.subr.bf16.mxu0 0
    %543 = vmatpush2.bf16.msra.mxu0 0
    %544 = vmatprep.subr.bf16.mxu0 0
    %545 = vmatpush2.bf16.msra.mxu0 0
    %546 = vmatprep.subr.bf16.mxu0 0
    %547 = vmatpush2.bf16.msra.mxu0 0
    %548 = vmatprep.subr.bf16.mxu0 0
    %549 = vmatpush2.bf16.msra.mxu0 0
    %550 = vmatprep.subr.bf16.mxu0 0
    %551 = vmatpush2.bf16.msra.mxu0 0
    %552 = vmatprep.subr.bf16.mxu0 0
    %553 = vmatpush2.bf16.msra.mxu0 0
    %554 = vmatprep.subr.bf16.mxu0 0
    %555 = vmatpush2.bf16.msra.mxu0 0
    %556 = vmatprep.mubr.bf16.mxu0 0
    %557 = vmatmul.mubr.bf16.gmra.mxu0 %v480
    %v558 = vpop.f32.mrf.mxu0
    %v559 = vadd.f32 0.0, %v558
    %v560 = vpop.f32.mrf.mxu0
    %v561 = vadd.f32 0.0, %v560
    %v562 = vpop.f32.mrf.mxu0
    %v563 = vadd.f32 0.0, %v562
    %v564 = vpop.f32.mrf.mxu0
    %v565 = vadd.f32 0.0, %v564
    %566 = vdwg.mxu0
    %v567 = vadd.f32 %v472, %v516
    %v568 = vadd.f32 %v473, %v518
    %v569 = vadd.f32 %v474, %v559
    %v570 = vadd.f32 %v475, %v561
    %v571 = vadd.f32 %v476, %v520
    %v572 = vadd.f32 %v477, %v522
    %v573 = vadd.f32 %v478, %v563
    %v574 = vadd.f32 %v479, %v565
    %v575 = vxor.u32 %v567, 2147483648
    %v576 = vxor.u32 %v568, 2147483648
    %v577 = vxor.u32 %v569, 2147483648
    %v578 = vxor.u32 %v571, 2147483648
    %v579 = vxor.u32 %v572, 2147483648
    %v580 = vxor.u32 %v573, 2147483648
    %v581 = vmul.f32 %v575, 1.442695
    %v582 = vpow.pop %v581
    %v583 = vmul.f32 %v576, 1.442695
    %v584 = vpow.pop %v583
    %v585 = vmul.f32 %v577, 1.442695
    %v586 = vpow.pop %v585
    %v587 = vmul.f32 %v578, 1.442695
    %v588 = vpow.pop %v587
    %v589 = vmul.f32 %v579, 1.442695
    %v590 = vpow.pop %v589
    %v591 = vmul.f32 %v580, 1.442695
    %v592 = vpow.pop %v591
    %v593 = vadd.f32 %v582, 1.0
    %v594 = vadd.f32 %v584, 1.0
    %v595 = vadd.f32 %v586, 1.0
    %v596 = vadd.f32 %v588, 1.0
    %v597 = vadd.f32 %v590, 1.0
    %v598 = vadd.f32 %v592, 1.0
    %v599 = vrcp.pop %v593
    %v600 = vmul.f32 1.0, %v599
    %v601 = vrcp.pop %v594
    %v602 = vmul.f32 1.0, %v601
    %v603 = vrcp.pop %v595
    %v604 = vmul.f32 1.0, %v603
    %v605 = vrcp.pop %v596
    %v606 = vmul.f32 1.0, %v605
    %v607 = vrcp.pop %v597
    %v608 = vmul.f32 1.0, %v607
    %v609 = vrcp.pop %v598
    %v610 = vmul.f32 1.0, %v609
    %v611 = vtanh.pop %v570
    %v612 = vtanh.pop %v574
    %v613 = vmul.f32 %v602, %v450
    %v614 = vmul.f32 %v608, %v451
    %v615 = vmul.f32 %v600, %v611
    %v616 = vmul.f32 %v606, %v612
    %v617 = vadd.f32 %v613, %v615
    %v618 = vadd.f32 %v614, %v616
    %v619 = vtanh.pop %v617
    %v620 = vtanh.pop %v618
    %v621 = vmul.f32 %v604, %v619
    %v622 = vmul.f32 %v610, %v620
    %623 = vset.pattern.permute.xlu0 2
    %624 = vperm.xlu0 %623, %v84
    %v625 = vpop.permute.xlu0 %624
    %627 = vset.pattern.permute.xlu0 2
    %628 = vperm.xlu0 %627, %v85
    %v629 = vpop.permute.xlu0 %628
    %v631 = vmul.f32 %v625, %v100
    %v632 = vmul.f32 %v625, %v104
    %v633 = vmul.f32 %v625, %v108
    %v634 = vmul.f32 %v625, %v112
    %v635 = vmul.f32 %v629, %v100
    %v636 = vmul.f32 %v629, %v104
    %v637 = vmul.f32 %v629, %v108
    %v638 = vmul.f32 %v629, %v112
    %v639 = vadd.f32 %v631, %v129
    %v640 = vadd.f32 %v632, %v133
    %v641 = vadd.f32 %v633, %v137
    %v642 = vadd.f32 %v634, %v141
    %v643 = vadd.f32 %v635, %v129
    %v644 = vadd.f32 %v636, %v133
    %v645 = vadd.f32 %v637, %v137
    %v646 = vadd.f32 %v638, %v141
    %v647 = vpack.c.bf16 %v622, %v621
    %648 = vmatprep.subr.bf16.mxu0 %v279
    %649 = vmatpush1.bf16.msra.mxu0 %v278
    %650 = vmatprep.subr.bf16.mxu0 %v275
    %651 = vmatpush1.bf16.msra.mxu0 %v274
    %652 = vmatprep.subr.bf16.mxu0 %v271
    %653 = vmatpush1.bf16.msra.mxu0 %v270
    %654 = vmatprep.subr.bf16.mxu0 %v267
    %655 = vmatpush1.bf16.msra.mxu0 %v266
    %656 = vmatprep.subr.bf16.mxu0 %v263
    %657 = vmatpush1.bf16.msra.mxu0 %v262
    %658 = vmatprep.subr.bf16.mxu0 %v259
    %659 = vmatpush1.bf16.msra.mxu0 %v258
    %660 = vmatprep.subr.bf16.mxu0 %v255
    %661 = vmatpush1.bf16.msra.mxu0 %v254
    %662 = vmatprep.subr.bf16.mxu0 %v251
    %663 = vmatpush1.bf16.msra.mxu0 %v250
    %664 = vmatprep.subr.bf16.mxu0 0
    %665 = vmatpush2.bf16.msra.mxu0 0
    %666 = vmatprep.subr.bf16.mxu0 0
    %667 = vmatpush2.bf16.msra.mxu0 0
    %668 = vmatprep.subr.bf16.mxu0 0
    %669 = vmatpush2.bf16.msra.mxu0 0
    %670 = vmatprep.subr.bf16.mxu0 0
    %671 = vmatpush2.bf16.msra.mxu0 0
    %672 = vmatprep.subr.bf16.mxu0 0
    %673 = vmatpush2.bf16.msra.mxu0 0
    %674 = vmatprep.subr.bf16.mxu0 0
    %675 = vmatpush2.bf16.msra.mxu0 0
    %676 = vmatprep.subr.bf16.mxu0 0
    %677 = vmatpush2.bf16.msra.mxu0 0
    %678 = vmatprep.subr.bf16.mxu0 0
    %679 = vmatpush2.bf16.msra.mxu0 0
    %680 = vmatprep.mubr.bf16.mxu0 0
    %681 = vmatmul.mubr.bf16.gmra.mxu0 %v647
    %v682 = vpop.f32.mrf.mxu0
    %v683 = vadd.f32 0.0, %v682
    %v684 = vpop.f32.mrf.mxu0
    %v685 = vadd.f32 0.0, %v684
    %v686 = vpop.f32.mrf.mxu0
    %v687 = vadd.f32 0.0, %v686
    %v688 = vpop.f32.mrf.mxu0
    %v689 = vadd.f32 0.0, %v688
    %690 = vdwg.mxu0
    %691 = vmatprep.subr.bf16.mxu0 %v281
    %692 = vmatpush1.bf16.msra.mxu0 %v280
    %693 = vmatprep.subr.bf16.mxu0 %v277
    %694 = vmatpush1.bf16.msra.mxu0 %v276
    %695 = vmatprep.subr.bf16.mxu0 %v273
    %696 = vmatpush1.bf16.msra.mxu0 %v272
    %697 = vmatprep.subr.bf16.mxu0 %v269
    %698 = vmatpush1.bf16.msra.mxu0 %v268
    %699 = vmatprep.subr.bf16.mxu0 %v265
    %700 = vmatpush1.bf16.msra.mxu0 %v264
    %701 = vmatprep.subr.bf16.mxu0 %v261
    %702 = vmatpush1.bf16.msra.mxu0 %v260
    %703 = vmatprep.subr.bf16.mxu0 %v257
    %704 = vmatpush1.bf16.msra.mxu0 %v256
    %705 = vmatprep.subr.bf16.mxu0 %v253
    %706 = vmatpush1.bf16.msra.mxu0 %v252
    %707 = vmatprep.subr.bf16.mxu0 0
    %708 = vmatpush2.bf16.msra.mxu0 0
    %709 = vmatprep.subr.bf16.mxu0 0
    %710 = vmatpush2.bf16.msra.mxu0 0
    %711 = vmatprep.subr.bf16.mxu0 0
    %712 = vmatpush2.bf16.msra.mxu0 0
    %713 = vmatprep.subr.bf16.mxu0 0
    %714 = vmatpush2.bf16.msra.mxu0 0
    %715 = vmatprep.subr.bf16.mxu0 0
    %716 = vmatpush2.bf16.msra.mxu0 0
    %717 = vmatprep.subr.bf16.mxu0 0
    %718 = vmatpush2.bf16.msra.mxu0 0
    %719 = vmatprep.subr.bf16.mxu0 0
    %720 = vmatpush2.bf16.msra.mxu0 0
    %721 = vmatprep.subr.bf16.mxu0 0
    %722 = vmatpush2.bf16.msra.mxu0 0
    %723 = vmatprep.mubr.bf16.mxu0 0
    %724 = vmatmul.mubr.bf16.gmra.mxu0 %v647
    %v725 = vpop.f32.mrf.mxu0
    %v726 = vadd.f32 0.0, %v725
    %v727 = vpop.f32.mrf.mxu0
    %v728 = vadd.f32 0.0, %v727
    %v729 = vpop.f32.mrf.mxu0
    %v730 = vadd.f32 0.0, %v729
    %v731 = vpop.f32.mrf.mxu0
    %v732 = vadd.f32 0.0, %v731
    %733 = vdwg.mxu0
    %v734 = vadd.f32 %v639, %v683
    %v735 = vadd.f32 %v640, %v685
    %v736 = vadd.f32 %v641, %v726
    %v737 = vadd.f32 %v642, %v728
    %v738 = vadd.f32 %v643, %v687
    %v739 = vadd.f32 %v644, %v689
    %v740 = vadd.f32 %v645, %v730
    %v741 = vadd.f32 %v646, %v732
    %v742 = vxor.u32 %v734, 2147483648
    %v743 = vxor.u32 %v735, 2147483648
    %v744 = vxor.u32 %v736, 2147483648
    %v745 = vxor.u32 %v738, 2147483648
    %v746 = vxor.u32 %v739, 2147483648
    %v747 = vxor.u32 %v740, 2147483648
    %v748 = vmul.f32 %v742, 1.442695
    %v749 = vpow.pop %v748
    %v750 = vmul.f32 %v743, 1.442695
    %v751 = vpow.pop %v750
    %v752 = vmul.f32 %v744, 1.442695
    %v753 = vpow.pop %v752
    %v754 = vmul.f32 %v745, 1.442695
    %v755 = vpow.pop %v754
    %v756 = vmul.f32 %v746, 1.442695
    %v757 = vpow.pop %v756
    %v758 = vmul.f32 %v747, 1.442695
    %v759 = vpow.pop %v758
    %v760 = vadd.f32 %v749, 1.0
    %v761 = vadd.f32 %v751, 1.0
    %v762 = vadd.f32 %v753, 1.0
    %v763 = vadd.f32 %v755, 1.0
    %v764 = vadd.f32 %v757, 1.0
    %v765 = vadd.f32 %v759, 1.0
    %v766 = vrcp.pop %v760
    %v767 = vmul.f32 1.0, %v766
    %v768 = vrcp.pop %v761
    %v769 = vmul.f32 1.0, %v768
    %v770 = vrcp.pop %v762
    %v771 = vmul.f32 1.0, %v770
    %v772 = vrcp.pop %v763
    %v773 = vmul.f32 1.0, %v772
    %v774 = vrcp.pop %v764
    %v775 = vmul.f32 1.0, %v774
    %v776 = vrcp.pop %v765
    %v777 = vmul.f32 1.0, %v776
    %v778 = vtanh.pop %v737
    %v779 = vtanh.pop %v741
    %v780 = vmul.f32 %v769, %v617
    %v781 = vmul.f32 %v775, %v618
    %v782 = vmul.f32 %v767, %v778
    %v783 = vmul.f32 %v773, %v779
    %v784 = vadd.f32 %v780, %v782
    %v785 = vadd.f32 %v781, %v783
    %v786 = vtanh.pop %v784
    %v787 = vtanh.pop %v785
    %v788 = vmul.f32 %v771, %v786
    %v789 = vmul.f32 %v777, %v787
    %790 = vset.pattern.permute.xlu0 3
    %791 = vperm.xlu0 %790, %v84
    %v792 = vpop.permute.xlu0 %791
    %794 = vset.pattern.permute.xlu0 3
    %795 = vperm.xlu0 %794, %v85
    %v796 = vpop.permute.xlu0 %795
    %v798 = vmul.f32 %v792, %v100
    %v799 = vmul.f32 %v792, %v104
    %v800 = vmul.f32 %v792, %v108
    %v801 = vmul.f32 %v792, %v112
    %v802 = vmul.f32 %v796, %v100
    %v803 = vmul.f32 %v796, %v104
    %v804 = vmul.f32 %v796, %v108
    %v805 = vmul.f32 %v796, %v112
    %v806 = vadd.f32 %v798, %v129
    %v807 = vadd.f32 %v799, %v133
    %v808 = vadd.f32 %v800, %v137
    %v809 = vadd.f32 %v801, %v141
    %v810 = vadd.f32 %v802, %v129
    %v811 = vadd.f32 %v803, %v133
    %v812 = vadd.f32 %v804, %v137
    %v813 = vadd.f32 %v805, %v141
    %v814 = vpack.c.bf16 %v789, %v788
    %815 = vmatprep.subr.bf16.mxu0 %v279
    %816 = vmatpush1.bf16.msra.mxu0 %v278
    %817 = vmatprep.subr.bf16.mxu0 %v275
    %818 = vmatpush1.bf16.msra.mxu0 %v274
    %819 = vmatprep.subr.bf16.mxu0 %v271
    %820 = vmatpush1.bf16.msra.mxu0 %v270
    %821 = vmatprep.subr.bf16.mxu0 %v267
    %822 = vmatpush1.bf16.msra.mxu0 %v266
    %823 = vmatprep.subr.bf16.mxu0 %v263
    %824 = vmatpush1.bf16.msra.mxu0 %v262
    %825 = vmatprep.subr.bf16.mxu0 %v259
    %826 = vmatpush1.bf16.msra.mxu0 %v258
    %827 = vmatprep.subr.bf16.mxu0 %v255
    %828 = vmatpush1.bf16.msra.mxu0 %v254
    %829 = vmatprep.subr.bf16.mxu0 %v251
    %830 = vmatpush1.bf16.msra.mxu0 %v250
    %831 = vmatprep.subr.bf16.mxu0 0
    %832 = vmatpush2.bf16.msra.mxu0 0
    %833 = vmatprep.subr.bf16.mxu0 0
    %834 = vmatpush2.bf16.msra.mxu0 0
    %835 = vmatprep.subr.bf16.mxu0 0
    %836 = vmatpush2.bf16.msra.mxu0 0
    %837 = vmatprep.subr.bf16.mxu0 0
    %838 = vmatpush2.bf16.msra.mxu0 0
    %839 = vmatprep.subr.bf16.mxu0 0
    %840 = vmatpush2.bf16.msra.mxu0 0
    %841 = vmatprep.subr.bf16.mxu0 0
    %842 = vmatpush2.bf16.msra.mxu0 0
    %843 = vmatprep.subr.bf16.mxu0 0
    %844 = vmatpush2.bf16.msra.mxu0 0
    %845 = vmatprep.subr.bf16.mxu0 0
    %846 = vmatpush2.bf16.msra.mxu0 0
    %847 = vmatprep.mubr.bf16.mxu0 0
    %848 = vmatmul.mubr.bf16.gmra.mxu0 %v814
    %v849 = vpop.f32.mrf.mxu0
    %v850 = vadd.f32 0.0, %v849
    %v851 = vpop.f32.mrf.mxu0
    %v852 = vadd.f32 0.0, %v851
    %v853 = vpop.f32.mrf.mxu0
    %v854 = vadd.f32 0.0, %v853
    %v855 = vpop.f32.mrf.mxu0
    %v856 = vadd.f32 0.0, %v855
    %857 = vdwg.mxu0
    %858 = vmatprep.subr.bf16.mxu0 %v281
    %859 = vmatpush1.bf16.msra.mxu0 %v280
    %860 = vmatprep.subr.bf16.mxu0 %v277
    %861 = vmatpush1.bf16.msra.mxu0 %v276
    %862 = vmatprep.subr.bf16.mxu0 %v273
    %863 = vmatpush1.bf16.msra.mxu0 %v272
    %864 = vmatprep.subr.bf16.mxu0 %v269
    %865 = vmatpush1.bf16.msra.mxu0 %v268
    %866 = vmatprep.subr.bf16.mxu0 %v265
    %867 = vmatpush1.bf16.msra.mxu0 %v264
    %868 = vmatprep.subr.bf16.mxu0 %v261
    %869 = vmatpush1.bf16.msra.mxu0 %v260
    %870 = vmatprep.subr.bf16.mxu0 %v257
    %871 = vmatpush1.bf16.msra.mxu0 %v256
    %872 = vmatprep.subr.bf16.mxu0 %v253
    %873 = vmatpush1.bf16.msra.mxu0 %v252
    %874 = vmatprep.subr.bf16.mxu0 0
    %875 = vmatpush2.bf16.msra.mxu0 0
    %876 = vmatprep.subr.bf16.mxu0 0
    %877 = vmatpush2.bf16.msra.mxu0 0
    %878 = vmatprep.subr.bf16.mxu0 0
    %879 = vmatpush2.bf16.msra.mxu0 0
    %880 = vmatprep.subr.bf16.mxu0 0
    %881 = vmatpush2.bf16.msra.mxu0 0
    %882 = vmatprep.subr.bf16.mxu0 0
    %883 = vmatpush2.bf16.msra.mxu0 0
    %884 = vmatprep.subr.bf16.mxu0 0
    %885 = vmatpush2.bf16.msra.mxu0 0
    %886 = vmatprep.subr.bf16.mxu0 0
    %887 = vmatpush2.bf16.msra.mxu0 0
    %888 = vmatprep.subr.bf16.mxu0 0
    %889 = vmatpush2.bf16.msra.mxu0 0
    %890 = vmatprep.mubr.bf16.mxu0 0
    %891 = vmatmul.mubr.bf16.gmra.mxu0 %v814
    %v892 = vpop.f32.mrf.mxu0
    %v893 = vadd.f32 0.0, %v892
    %v894 = vpop.f32.mrf.mxu0
    %v895 = vadd.f32 0.0, %v894
    %v896 = vpop.f32.mrf.mxu0
    %v897 = vadd.f32 0.0, %v896
    %v898 = vpop.f32.mrf.mxu0
    %v899 = vadd.f32 0.0, %v898
    %900 = vdwg.mxu0
    %v901 = vadd.f32 %v806, %v850
    %v902 = vadd.f32 %v807, %v852
    %v903 = vadd.f32 %v808, %v893
    %v904 = vadd.f32 %v809, %v895
    %v905 = vadd.f32 %v810, %v854
    %v906 = vadd.f32 %v811, %v856
    %v907 = vadd.f32 %v812, %v897
    %v908 = vadd.f32 %v813, %v899
    %v909 = vxor.u32 %v901, 2147483648
    %v910 = vxor.u32 %v902, 2147483648
    %v911 = vxor.u32 %v903, 2147483648
    %v912 = vxor.u32 %v905, 2147483648
    %v913 = vxor.u32 %v906, 2147483648
    %v914 = vxor.u32 %v907, 2147483648
    %v915 = vmul.f32 %v909, 1.442695
    %v916 = vpow.pop %v915
    %v917 = vmul.f32 %v910, 1.442695
    %v918 = vpow.pop %v917
    %v919 = vmul.f32 %v911, 1.442695
    %v920 = vpow.pop %v919
    %v921 = vmul.f32 %v912, 1.442695
    %v922 = vpow.pop %v921
    %v923 = vmul.f32 %v913, 1.442695
    %v924 = vpow.pop %v923
    %v925 = vmul.f32 %v914, 1.442695
    %v926 = vpow.pop %v925
    %v927 = vadd.f32 %v916, 1.0
    %v928 = vadd.f32 %v918, 1.0
    %v929 = vadd.f32 %v920, 1.0
    %v930 = vadd.f32 %v922, 1.0
    %v931 = vadd.f32 %v924, 1.0
    %v932 = vadd.f32 %v926, 1.0
    %v933 = vrcp.pop %v927
    %v934 = vmul.f32 1.0, %v933
    %v935 = vrcp.pop %v928
    %v936 = vmul.f32 1.0, %v935
    %v937 = vrcp.pop %v929
    %v938 = vmul.f32 1.0, %v937
    %v939 = vrcp.pop %v930
    %v940 = vmul.f32 1.0, %v939
    %v941 = vrcp.pop %v931
    %v942 = vmul.f32 1.0, %v941
    %v943 = vrcp.pop %v932
    %v944 = vmul.f32 1.0, %v943
    %v945 = vtanh.pop %v904
    %v946 = vtanh.pop %v908
    %v947 = vmul.f32 %v936, %v784
    %v948 = vmul.f32 %v942, %v785
    %v949 = vmul.f32 %v934, %v945
    %v950 = vmul.f32 %v940, %v946
    %v951 = vadd.f32 %v947, %v949
    %v952 = vadd.f32 %v948, %v950
    %v953 = vtanh.pop %v951
    %v954 = vtanh.pop %v952
    %v955 = vmul.f32 %v938, %v953
    %v956 = vmul.f32 %v944, %v954
    %957 = vset.pattern.permute.xlu0 4
    %958 = vperm.xlu0 %957, %v84
    %v959 = vpop.permute.xlu0 %958
    %961 = vset.pattern.permute.xlu0 4
    %962 = vperm.xlu0 %961, %v85
    %v963 = vpop.permute.xlu0 %962
    %v965 = vmul.f32 %v959, %v100
    %v966 = vmul.f32 %v959, %v104
    %v967 = vmul.f32 %v959, %v108
    %v968 = vmul.f32 %v959, %v112
    %v969 = vmul.f32 %v963, %v100
    %v970 = vmul.f32 %v963, %v104
    %v971 = vmul.f32 %v963, %v108
    %v972 = vmul.f32 %v963, %v112
    %v973 = vadd.f32 %v965, %v129
    %v974 = vadd.f32 %v966, %v133
    %v975 = vadd.f32 %v967, %v137
    %v976 = vadd.f32 %v968, %v141
    %v977 = vadd.f32 %v969, %v129
    %v978 = vadd.f32 %v970, %v133
    %v979 = vadd.f32 %v971, %v137
    %v980 = vadd.f32 %v972, %v141
    %v981 = vpack.c.bf16 %v956, %v955
    %982 = vmatprep.subr.bf16.mxu0 %v279
    %983 = vmatpush1.bf16.msra.mxu0 %v278
    %984 = vmatprep.subr.bf16.mxu0 %v275
    %985 = vmatpush1.bf16.msra.mxu0 %v274
    %986 = vmatprep.subr.bf16.mxu0 %v271
    %987 = vmatpush1.bf16.msra.mxu0 %v270
    %988 = vmatprep.subr.bf16.mxu0 %v267
    %989 = vmatpush1.bf16.msra.mxu0 %v266
    %990 = vmatprep.subr.bf16.mxu0 %v263
    %991 = vmatpush1.bf16.msra.mxu0 %v262
    %992 = vmatprep.subr.bf16.mxu0 %v259
    %993 = vmatpush1.bf16.msra.mxu0 %v258
    %994 = vmatprep.subr.bf16.mxu0 %v255
    %995 = vmatpush1.bf16.msra.mxu0 %v254
    %996 = vmatprep.subr.bf16.mxu0 %v251
    %997 = vmatpush1.bf16.msra.mxu0 %v250
    %998 = vmatprep.subr.bf16.mxu0 0
    %999 = vmatpush2.bf16.msra.mxu0 0
    %1000 = vmatprep.subr.bf16.mxu0 0
    %1001 = vmatpush2.bf16.msra.mxu0 0
    %1002 = vmatprep.subr.bf16.mxu0 0
    %1003 = vmatpush2.bf16.msra.mxu0 0
    %1004 = vmatprep.subr.bf16.mxu0 0
    %1005 = vmatpush2.bf16.msra.mxu0 0
    %1006 = vmatprep.subr.bf16.mxu0 0
    %1007 = vmatpush2.bf16.msra.mxu0 0
    %1008 = vmatprep.subr.bf16.mxu0 0
    %1009 = vmatpush2.bf16.msra.mxu0 0
    %1010 = vmatprep.subr.bf16.mxu0 0
    %1011 = vmatpush2.bf16.msra.mxu0 0
    %1012 = vmatprep.subr.bf16.mxu0 0
    %1013 = vmatpush2.bf16.msra.mxu0 0
    %1014 = vmatprep.mubr.bf16.mxu0 0
    %1015 = vmatmul.mubr.bf16.gmra.mxu0 %v981
    %v1016 = vpop.f32.mrf.mxu0
    %v1017 = vadd.f32 0.0, %v1016
    %v1018 = vpop.f32.mrf.mxu0
    %v1019 = vadd.f32 0.0, %v1018
    %v1020 = vpop.f32.mrf.mxu0
    %v1021 = vadd.f32 0.0, %v1020
    %v1022 = vpop.f32.mrf.mxu0
    %v1023 = vadd.f32 0.0, %v1022
    %1024 = vdwg.mxu0
    %1025 = vmatprep.subr.bf16.mxu0 %v281
    %1026 = vmatpush1.bf16.msra.mxu0 %v280
    %1027 = vmatprep.subr.bf16.mxu0 %v277
    %1028 = vmatpush1.bf16.msra.mxu0 %v276
    %1029 = vmatprep.subr.bf16.mxu0 %v273
    %1030 = vmatpush1.bf16.msra.mxu0 %v272
    %1031 = vmatprep.subr.bf16.mxu0 %v269
    %1032 = vmatpush1.bf16.msra.mxu0 %v268
    %1033 = vmatprep.subr.bf16.mxu0 %v265
    %1034 = vmatpush1.bf16.msra.mxu0 %v264
    %1035 = vmatprep.subr.bf16.mxu0 %v261
    %1036 = vmatpush1.bf16.msra.mxu0 %v260
    %1037 = vmatprep.subr.bf16.mxu0 %v257
    %1038 = vmatpush1.bf16.msra.mxu0 %v256
    %1039 = vmatprep.subr.bf16.mxu0 %v253
    %1040 = vmatpush1.bf16.msra.mxu0 %v252
    %1041 = vmatprep.subr.bf16.mxu0 0
    %1042 = vmatpush2.bf16.msra.mxu0 0
    %1043 = vmatprep.subr.bf16.mxu0 0
    %1044 = vmatpush2.bf16.msra.mxu0 0
    %1045 = vmatprep.subr.bf16.mxu0 0
    %1046 = vmatpush2.bf16.msra.mxu0 0
    %1047 = vmatprep.subr.bf16.mxu0 0
    %1048 = vmatpush2.bf16.msra.mxu0 0
    %1049 = vmatprep.subr.bf16.mxu0 0
    %1050 = vmatpush2.bf16.msra.mxu0 0
    %1051 = vmatprep.subr.bf16.mxu0 0
    %1052 = vmatpush2.bf16.msra.mxu0 0
    %1053 = vmatprep.subr.bf16.mxu0 0
    %1054 = vmatpush2.bf16.msra.mxu0 0
    %1055 = vmatprep.subr.bf16.mxu0 0
    %1056 = vmatpush2.bf16.msra.mxu0 0
    %1057 = vmatprep.mubr.bf16.mxu0 0
    %1058 = vmatmul.mubr.bf16.gmra.mxu0 %v981
    %v1059 = vpop.f32.mrf.mxu0
    %v1060 = vadd.f32 0.0, %v1059
    %v1061 = vpop.f32.mrf.mxu0
    %v1062 = vadd.f32 0.0, %v1061
    %v1063 = vpop.f32.mrf.mxu0
    %v1064 = vadd.f32 0.0, %v1063
    %v1065 = vpop.f32.mrf.mxu0
    %v1066 = vadd.f32 0.0, %v1065
    %1067 = vdwg.mxu0
    %v1068 = vadd.f32 %v973, %v1017
    %v1069 = vadd.f32 %v974, %v1019
    %v1070 = vadd.f32 %v975, %v1060
    %v1071 = vadd.f32 %v976, %v1062
    %v1072 = vadd.f32 %v977, %v1021
    %v1073 = vadd.f32 %v978, %v1023
    %v1074 = vadd.f32 %v979, %v1064
    %v1075 = vadd.f32 %v980, %v1066
    %v1076 = vxor.u32 %v1068, 2147483648
    %v1077 = vxor.u32 %v1069, 2147483648
    %v1078 = vxor.u32 %v1070, 2147483648
    %v1079 = vxor.u32 %v1072, 2147483648
    %v1080 = vxor.u32 %v1073, 2147483648
    %v1081 = vxor.u32 %v1074, 2147483648
    %v1082 = vmul.f32 %v1076, 1.442695
    %v1083 = vpow.pop %v1082
    %v1084 = vmul.f32 %v1077, 1.442695
    %v1085 = vpow.pop %v1084
    %v1086 = vmul.f32 %v1078, 1.442695
    %v1087 = vpow.pop %v1086
    %v1088 = vmul.f32 %v1079, 1.442695
    %v1089 = vpow.pop %v1088
    %v1090 = vmul.f32 %v1080, 1.442695
    %v1091 = vpow.pop %v1090
    %v1092 = vmul.f32 %v1081, 1.442695
    %v1093 = vpow.pop %v1092
    %v1094 = vadd.f32 %v1083, 1.0
    %v1095 = vadd.f32 %v1085, 1.0
    %v1096 = vadd.f32 %v1087, 1.0
    %v1097 = vadd.f32 %v1089, 1.0
    %v1098 = vadd.f32 %v1091, 1.0
    %v1099 = vadd.f32 %v1093, 1.0
    %v1100 = vrcp.pop %v1094
    %v1101 = vmul.f32 1.0, %v1100
    %v1102 = vrcp.pop %v1095
    %v1103 = vmul.f32 1.0, %v1102
    %v1104 = vrcp.pop %v1096
    %v1105 = vmul.f32 1.0, %v1104
    %v1106 = vrcp.pop %v1097
    %v1107 = vmul.f32 1.0, %v1106
    %v1108 = vrcp.pop %v1098
    %v1109 = vmul.f32 1.0, %v1108
    %v1110 = vrcp.pop %v1099
    %v1111 = vmul.f32 1.0, %v1110
    %v1112 = vtanh.pop %v1071
    %v1113 = vtanh.pop %v1075
    %v1114 = vmul.f32 %v1103, %v951
    %v1115 = vmul.f32 %v1109, %v952
    %v1116 = vmul.f32 %v1101, %v1112
    %v1117 = vmul.f32 %v1107, %v1113
    %v1118 = vadd.f32 %v1114, %v1116
    %v1119 = vadd.f32 %v1115, %v1117
    %v1120 = vtanh.pop %v1118
    %v1121 = vtanh.pop %v1119
    %v1122 = vmul.f32 %v1105, %v1120
    %v1123 = vmul.f32 %v1111, %v1121
    %1124 = vset.pattern.permute.xlu0 5
    %1125 = vperm.xlu0 %1124, %v84
    %v1126 = vpop.permute.xlu0 %1125
    %1128 = vset.pattern.permute.xlu0 5
    %1129 = vperm.xlu0 %1128, %v85
    %v1130 = vpop.permute.xlu0 %1129
    %v1132 = vmul.f32 %v1126, %v100
    %v1133 = vmul.f32 %v1126, %v104
    %v1134 = vmul.f32 %v1126, %v108
    %v1135 = vmul.f32 %v1126, %v112
    %v1136 = vmul.f32 %v1130, %v100
    %v1137 = vmul.f32 %v1130, %v104
    %v1138 = vmul.f32 %v1130, %v108
    %v1139 = vmul.f32 %v1130, %v112
    %v1140 = vadd.f32 %v1132, %v129
    %v1141 = vadd.f32 %v1133, %v133
    %v1142 = vadd.f32 %v1134, %v137
    %v1143 = vadd.f32 %v1135, %v141
    %v1144 = vadd.f32 %v1136, %v129
    %v1145 = vadd.f32 %v1137, %v133
    %v1146 = vadd.f32 %v1138, %v137
    %v1147 = vadd.f32 %v1139, %v141
    %v1148 = vpack.c.bf16 %v1123, %v1122
    %1149 = vmatprep.subr.bf16.mxu0 %v279
    %1150 = vmatpush1.bf16.msra.mxu0 %v278
    %1151 = vmatprep.subr.bf16.mxu0 %v275
    %1152 = vmatpush1.bf16.msra.mxu0 %v274
    %1153 = vmatprep.subr.bf16.mxu0 %v271
    %1154 = vmatpush1.bf16.msra.mxu0 %v270
    %1155 = vmatprep.subr.bf16.mxu0 %v267
    %1156 = vmatpush1.bf16.msra.mxu0 %v266
    %1157 = vmatprep.subr.bf16.mxu0 %v263
    %1158 = vmatpush1.bf16.msra.mxu0 %v262
    %1159 = vmatprep.subr.bf16.mxu0 %v259
    %1160 = vmatpush1.bf16.msra.mxu0 %v258
    %1161 = vmatprep.subr.bf16.mxu0 %v255
    %1162 = vmatpush1.bf16.msra.mxu0 %v254
    %1163 = vmatprep.subr.bf16.mxu0 %v251
    %1164 = vmatpush1.bf16.msra.mxu0 %v250
    %1165 = vmatprep.subr.bf16.mxu0 0
    %1166 = vmatpush2.bf16.msra.mxu0 0
    %1167 = vmatprep.subr.bf16.mxu0 0
    %1168 = vmatpush2.bf16.msra.mxu0 0
    %1169 = vmatprep.subr.bf16.mxu0 0
    %1170 = vmatpush2.bf16.msra.mxu0 0
    %1171 = vmatprep.subr.bf16.mxu0 0
    %1172 = vmatpush2.bf16.msra.mxu0 0
    %1173 = vmatprep.subr.bf16.mxu0 0
    %1174 = vmatpush2.bf16.msra.mxu0 0
    %1175 = vmatprep.subr.bf16.mxu0 0
    %1176 = vmatpush2.bf16.msra.mxu0 0
    %1177 = vmatprep.subr.bf16.mxu0 0
    %1178 = vmatpush2.bf16.msra.mxu0 0
    %1179 = vmatprep.subr.bf16.mxu0 0
    %1180 = vmatpush2.bf16.msra.mxu0 0
    %1181 = vmatprep.mubr.bf16.mxu0 0
    %1182 = vmatmul.mubr.bf16.gmra.mxu0 %v1148
    %v1183 = vpop.f32.mrf.mxu0
    %v1184 = vadd.f32 0.0, %v1183
    %v1185 = vpop.f32.mrf.mxu0
    %v1186 = vadd.f32 0.0, %v1185
    %v1187 = vpop.f32.mrf.mxu0
    %v1188 = vadd.f32 0.0, %v1187
    %v1189 = vpop.f32.mrf.mxu0
    %v1190 = vadd.f32 0.0, %v1189
    %1191 = vdwg.mxu0
    %1192 = vmatprep.subr.bf16.mxu0 %v281
    %1193 = vmatpush1.bf16.msra.mxu0 %v280
    %1194 = vmatprep.subr.bf16.mxu0 %v277
    %1195 = vmatpush1.bf16.msra.mxu0 %v276
    %1196 = vmatprep.subr.bf16.mxu0 %v273
    %1197 = vmatpush1.bf16.msra.mxu0 %v272
    %1198 = vmatprep.subr.bf16.mxu0 %v269
    %1199 = vmatpush1.bf16.msra.mxu0 %v268
    %1200 = vmatprep.subr.bf16.mxu0 %v265
    %1201 = vmatpush1.bf16.msra.mxu0 %v264
    %1202 = vmatprep.subr.bf16.mxu0 %v261
    %1203 = vmatpush1.bf16.msra.mxu0 %v260
    %1204 = vmatprep.subr.bf16.mxu0 %v257
    %1205 = vmatpush1.bf16.msra.mxu0 %v256
    %1206 = vmatprep.subr.bf16.mxu0 %v253
    %1207 = vmatpush1.bf16.msra.mxu0 %v252
    %1208 = vmatprep.subr.bf16.mxu0 0
    %1209 = vmatpush2.bf16.msra.mxu0 0
    %1210 = vmatprep.subr.bf16.mxu0 0
    %1211 = vmatpush2.bf16.msra.mxu0 0
    %1212 = vmatprep.subr.bf16.mxu0 0
    %1213 = vmatpush2.bf16.msra.mxu0 0
    %1214 = vmatprep.subr.bf16.mxu0 0
    %1215 = vmatpush2.bf16.msra.mxu0 0
    %1216 = vmatprep.subr.bf16.mxu0 0
    %1217 = vmatpush2.bf16.msra.mxu0 0
    %1218 = vmatprep.subr.bf16.mxu0 0
    %1219 = vmatpush2.bf16.msra.mxu0 0
    %1220 = vmatprep.subr.bf16.mxu0 0
    %1221 = vmatpush2.bf16.msra.mxu0 0
    %1222 = vmatprep.subr.bf16.mxu0 0
    %1223 = vmatpush2.bf16.msra.mxu0 0
    %1224 = vmatprep.mubr.bf16.mxu0 0
    %1225 = vmatmul.mubr.bf16.gmra.mxu0 %v1148
    %v1226 = vpop.f32.mrf.mxu0
    %v1227 = vadd.f32 0.0, %v1226
    %v1228 = vpop.f32.mrf.mxu0
    %v1229 = vadd.f32 0.0, %v1228
    %v1230 = vpop.f32.mrf.mxu0
    %v1231 = vadd.f32 0.0, %v1230
    %v1232 = vpop.f32.mrf.mxu0
    %v1233 = vadd.f32 0.0, %v1232
    %1234 = vdwg.mxu0
    %v1235 = vadd.f32 %v1140, %v1184
    %v1236 = vadd.f32 %v1141, %v1186
    %v1237 = vadd.f32 %v1142, %v1227
    %v1238 = vadd.f32 %v1143, %v1229
    %v1239 = vadd.f32 %v1144, %v1188
    %v1240 = vadd.f32 %v1145, %v1190
    %v1241 = vadd.f32 %v1146, %v1231
    %v1242 = vadd.f32 %v1147, %v1233
    %v1243 = vxor.u32 %v1235, 2147483648
    %v1244 = vxor.u32 %v1236, 2147483648
    %v1245 = vxor.u32 %v1237, 2147483648
    %v1246 = vxor.u32 %v1239, 2147483648
    %v1247 = vxor.u32 %v1240, 2147483648
    %v1248 = vxor.u32 %v1241, 2147483648
    %v1249 = vmul.f32 %v1243, 1.442695
    %v1250 = vpow.pop %v1249
    %v1251 = vmul.f32 %v1244, 1.442695
    %v1252 = vpow.pop %v1251
    %v1253 = vmul.f32 %v1245, 1.442695
    %v1254 = vpow.pop %v1253
    %v1255 = vmul.f32 %v1246, 1.442695
    %v1256 = vpow.pop %v1255
    %v1257 = vmul.f32 %v1247, 1.442695
    %v1258 = vpow.pop %v1257
    %v1259 = vmul.f32 %v1248, 1.442695
    %v1260 = vpow.pop %v1259
    %v1261 = vadd.f32 %v1250, 1.0
    %v1262 = vadd.f32 %v1252, 1.0
    %v1263 = vadd.f32 %v1254, 1.0
    %v1264 = vadd.f32 %v1256, 1.0
    %v1265 = vadd.f32 %v1258, 1.0
    %v1266 = vadd.f32 %v1260, 1.0
    %v1267 = vrcp.pop %v1261
    %v1268 = vmul.f32 1.0, %v1267
    %v1269 = vrcp.pop %v1262
    %v1270 = vmul.f32 1.0, %v1269
    %v1271 = vrcp.pop %v1263
    %v1272 = vmul.f32 1.0, %v1271
    %v1273 = vrcp.pop %v1264
    %v1274 = vmul.f32 1.0, %v1273
    %v1275 = vrcp.pop %v1265
    %v1276 = vmul.f32 1.0, %v1275
    %v1277 = vrcp.pop %v1266
    %v1278 = vmul.f32 1.0, %v1277
    %v1279 = vtanh.pop %v1238
    %v1280 = vtanh.pop %v1242
    %v1281 = vmul.f32 %v1270, %v1118
    %v1282 = vmul.f32 %v1276, %v1119
    %v1283 = vmul.f32 %v1268, %v1279
    %v1284 = vmul.f32 %v1274, %v1280
    %v1285 = vadd.f32 %v1281, %v1283
    %v1286 = vadd.f32 %v1282, %v1284
    %v1287 = vtanh.pop %v1285
    %v1288 = vtanh.pop %v1286
    %v1289 = vmul.f32 %v1272, %v1287
    %v1290 = vmul.f32 %v1278, %v1288
    %1291 = vset.pattern.permute.xlu0 6
    %1292 = vperm.xlu0 %1291, %v84
    %v1293 = vpop.permute.xlu0 %1292
    %1295 = vset.pattern.permute.xlu0 6
    %1296 = vperm.xlu0 %1295, %v85
    %v1297 = vpop.permute.xlu0 %1296
    %v1299 = vmul.f32 %v1293, %v100
    %v1300 = vmul.f32 %v1293, %v104
    %v1301 = vmul.f32 %v1293, %v108
    %v1302 = vmul.f32 %v1293, %v112
    %v1303 = vmul.f32 %v1297, %v100
    %v1304 = vmul.f32 %v1297, %v104
    %v1305 = vmul.f32 %v1297, %v108
    %v1306 = vmul.f32 %v1297, %v112
    %v1307 = vadd.f32 %v1299, %v129
    %v1308 = vadd.f32 %v1300, %v133
    %v1309 = vadd.f32 %v1301, %v137
    %v1310 = vadd.f32 %v1302, %v141
    %v1311 = vadd.f32 %v1303, %v129
    %v1312 = vadd.f32 %v1304, %v133
    %v1313 = vadd.f32 %v1305, %v137
    %v1314 = vadd.f32 %v1306, %v141
    %v1315 = vpack.c.bf16 %v1290, %v1289
    %1316 = vmatprep.subr.bf16.mxu0 %v279
    %1317 = vmatpush1.bf16.msra.mxu0 %v278
    %1318 = vmatprep.subr.bf16.mxu0 %v275
    %1319 = vmatpush1.bf16.msra.mxu0 %v274
    %1320 = vmatprep.subr.bf16.mxu0 %v271
    %1321 = vmatpush1.bf16.msra.mxu0 %v270
    %1322 = vmatprep.subr.bf16.mxu0 %v267
    %1323 = vmatpush1.bf16.msra.mxu0 %v266
    %1324 = vmatprep.subr.bf16.mxu0 %v263
    %1325 = vmatpush1.bf16.msra.mxu0 %v262
    %1326 = vmatprep.subr.bf16.mxu0 %v259
    %1327 = vmatpush1.bf16.msra.mxu0 %v258
    %1328 = vmatprep.subr.bf16.mxu0 %v255
    %1329 = vmatpush1.bf16.msra.mxu0 %v254
    %1330 = vmatprep.subr.bf16.mxu0 %v251
    %1331 = vmatpush1.bf16.msra.mxu0 %v250
    %1332 = vmatprep.subr.bf16.mxu0 0
    %1333 = vmatpush2.bf16.msra.mxu0 0
    %1334 = vmatprep.subr.bf16.mxu0 0
    %1335 = vmatpush2.bf16.msra.mxu0 0
    %1336 = vmatprep.subr.bf16.mxu0 0
    %1337 = vmatpush2.bf16.msra.mxu0 0
    %1338 = vmatprep.subr.bf16.mxu0 0
    %1339 = vmatpush2.bf16.msra.mxu0 0
    %1340 = vmatprep.subr.bf16.mxu0 0
    %1341 = vmatpush2.bf16.msra.mxu0 0
    %1342 = vmatprep.subr.bf16.mxu0 0
    %1343 = vmatpush2.bf16.msra.mxu0 0
    %1344 = vmatprep.subr.bf16.mxu0 0
    %1345 = vmatpush2.bf16.msra.mxu0 0
    %1346 = vmatprep.subr.bf16.mxu0 0
    %1347 = vmatpush2.bf16.msra.mxu0 0
    %1348 = vmatprep.mubr.bf16.mxu0 0
    %1349 = vmatmul.mubr.bf16.gmra.mxu0 %v1315
    %v1350 = vpop.f32.mrf.mxu0
    %v1351 = vadd.f32 0.0, %v1350
    %v1352 = vpop.f32.mrf.mxu0
    %v1353 = vadd.f32 0.0, %v1352
    %v1354 = vpop.f32.mrf.mxu0
    %v1355 = vadd.f32 0.0, %v1354
    %v1356 = vpop.f32.mrf.mxu0
    %v1357 = vadd.f32 0.0, %v1356
    %1358 = vdwg.mxu0
    %1359 = vmatprep.subr.bf16.mxu0 %v281
    %1360 = vmatpush1.bf16.msra.mxu0 %v280
    %1361 = vmatprep.subr.bf16.mxu0 %v277
    %1362 = vmatpush1.bf16.msra.mxu0 %v276
    %1363 = vmatprep.subr.bf16.mxu0 %v273
    %1364 = vmatpush1.bf16.msra.mxu0 %v272
    %1365 = vmatprep.subr.bf16.mxu0 %v269
    %1366 = vmatpush1.bf16.msra.mxu0 %v268
    %1367 = vmatprep.subr.bf16.mxu0 %v265
    %1368 = vmatpush1.bf16.msra.mxu0 %v264
    %1369 = vmatprep.subr.bf16.mxu0 %v261
    %1370 = vmatpush1.bf16.msra.mxu0 %v260
    %1371 = vmatprep.subr.bf16.mxu0 %v257
    %1372 = vmatpush1.bf16.msra.mxu0 %v256
    %1373 = vmatprep.subr.bf16.mxu0 %v253
    %1374 = vmatpush1.bf16.msra.mxu0 %v252
    %1375 = vmatprep.subr.bf16.mxu0 0
    %1376 = vmatpush2.bf16.msra.mxu0 0
    %1377 = vmatprep.subr.bf16.mxu0 0
    %1378 = vmatpush2.bf16.msra.mxu0 0
    %1379 = vmatprep.subr.bf16.mxu0 0
    %1380 = vmatpush2.bf16.msra.mxu0 0
    %1381 = vmatprep.subr.bf16.mxu0 0
    %1382 = vmatpush2.bf16.msra.mxu0 0
    %1383 = vmatprep.subr.bf16.mxu0 0
    %1384 = vmatpush2.bf16.msra.mxu0 0
    %1385 = vmatprep.subr.bf16.mxu0 0
    %1386 = vmatpush2.bf16.msra.mxu0 0
    %1387 = vmatprep.subr.bf16.mxu0 0
    %1388 = vmatpush2.bf16.msra.mxu0 0
    %1389 = vmatprep.subr.bf16.mxu0 0
    %1390 = vmatpush2.bf16.msra.mxu0 0
    %1391 = vmatprep.mubr.bf16.mxu0 0
    %1392 = vmatmul.mubr.bf16.gmra.mxu0 %v1315
    %v1393 = vpop.f32.mrf.mxu0
    %v1394 = vadd.f32 0.0, %v1393
    %v1395 = vpop.f32.mrf.mxu0
    %v1396 = vadd.f32 0.0, %v1395
    %v1397 = vpop.f32.mrf.mxu0
    %v1398 = vadd.f32 0.0, %v1397
    %v1399 = vpop.f32.mrf.mxu0
    %v1400 = vadd.f32 0.0, %v1399
    %1401 = vdwg.mxu0
    %v1402 = vadd.f32 %v1307, %v1351
    %v1403 = vadd.f32 %v1308, %v1353
    %v1404 = vadd.f32 %v1309, %v1394
    %v1405 = vadd.f32 %v1310, %v1396
    %v1406 = vadd.f32 %v1311, %v1355
    %v1407 = vadd.f32 %v1312, %v1357
    %v1408 = vadd.f32 %v1313, %v1398
    %v1409 = vadd.f32 %v1314, %v1400
    %v1410 = vxor.u32 %v1402, 2147483648
    %v1411 = vxor.u32 %v1403, 2147483648
    %v1412 = vxor.u32 %v1404, 2147483648
    %v1413 = vxor.u32 %v1406, 2147483648
    %v1414 = vxor.u32 %v1407, 2147483648
    %v1415 = vxor.u32 %v1408, 2147483648
    %v1416 = vmul.f32 %v1410, 1.442695
    %v1417 = vpow.pop %v1416
    %v1418 = vmul.f32 %v1411, 1.442695
    %v1419 = vpow.pop %v1418
    %v1420 = vmul.f32 %v1412, 1.442695
    %v1421 = vpow.pop %v1420
    %v1422 = vmul.f32 %v1413, 1.442695
    %v1423 = vpow.pop %v1422
    %v1424 = vmul.f32 %v1414, 1.442695
    %v1425 = vpow.pop %v1424
    %v1426 = vmul.f32 %v1415, 1.442695
    %v1427 = vpow.pop %v1426
    %v1428 = vadd.f32 %v1417, 1.0
    %v1429 = vadd.f32 %v1419, 1.0
    %v1430 = vadd.f32 %v1421, 1.0
    %v1431 = vadd.f32 %v1423, 1.0
    %v1432 = vadd.f32 %v1425, 1.0
    %v1433 = vadd.f32 %v1427, 1.0
    %v1434 = vrcp.pop %v1428
    %v1435 = vmul.f32 1.0, %v1434
    %v1436 = vrcp.pop %v1429
    %v1437 = vmul.f32 1.0, %v1436
    %v1438 = vrcp.pop %v1430
    %v1439 = vmul.f32 1.0, %v1438
    %v1440 = vrcp.pop %v1431
    %v1441 = vmul.f32 1.0, %v1440
    %v1442 = vrcp.pop %v1432
    %v1443 = vmul.f32 1.0, %v1442
    %v1444 = vrcp.pop %v1433
    %v1445 = vmul.f32 1.0, %v1444
    %v1446 = vtanh.pop %v1405
    %v1447 = vtanh.pop %v1409
    %v1448 = vmul.f32 %v1437, %v1285
    %v1449 = vmul.f32 %v1443, %v1286
    %v1450 = vmul.f32 %v1435, %v1446
    %v1451 = vmul.f32 %v1441, %v1447
    %v1452 = vadd.f32 %v1448, %v1450
    %v1453 = vadd.f32 %v1449, %v1451
    %v1454 = vtanh.pop %v1452
    %v1455 = vtanh.pop %v1453
    %v1456 = vmul.f32 %v1439, %v1454
    %v1457 = vmul.f32 %v1445, %v1455
    %1458 = vset.pattern.permute.xlu0 7
    %1459 = vperm.xlu0 %1458, %v84
    %v1460 = vpop.permute.xlu0 %1459
    %1462 = vset.pattern.permute.xlu0 7
    %1463 = vperm.xlu0 %1462, %v85
    %v1464 = vpop.permute.xlu0 %1463
    %v1466 = vmul.f32 %v1460, %v100
    %v1467 = vmul.f32 %v1460, %v104
    %v1468 = vmul.f32 %v1460, %v108
    %v1469 = vmul.f32 %v1460, %v112
    %v1470 = vmul.f32 %v1464, %v100
    %v1471 = vmul.f32 %v1464, %v104
    %v1472 = vmul.f32 %v1464, %v108
    %v1473 = vmul.f32 %v1464, %v112
    %v1474 = vadd.f32 %v1466, %v129
    %v1475 = vadd.f32 %v1467, %v133
    %v1476 = vadd.f32 %v1468, %v137
    %v1477 = vadd.f32 %v1469, %v141
    %v1478 = vadd.f32 %v1470, %v129
    %v1479 = vadd.f32 %v1471, %v133
    %v1480 = vadd.f32 %v1472, %v137
    %v1481 = vadd.f32 %v1473, %v141
    %v1482 = vpack.c.bf16 %v1457, %v1456
    %1483 = vmatprep.subr.bf16.mxu0 %v279
    %1484 = vmatpush1.bf16.msra.mxu0 %v278
    %1485 = vmatprep.subr.bf16.mxu0 %v275
    %1486 = vmatpush1.bf16.msra.mxu0 %v274
    %1487 = vmatprep.subr.bf16.mxu0 %v271
    %1488 = vmatpush1.bf16.msra.mxu0 %v270
    %1489 = vmatprep.subr.bf16.mxu0 %v267
    %1490 = vmatpush1.bf16.msra.mxu0 %v266
    %1491 = vmatprep.subr.bf16.mxu0 %v263
    %1492 = vmatpush1.bf16.msra.mxu0 %v262
    %1493 = vmatprep.subr.bf16.mxu0 %v259
    %1494 = vmatpush1.bf16.msra.mxu0 %v258
    %1495 = vmatprep.subr.bf16.mxu0 %v255
    %1496 = vmatpush1.bf16.msra.mxu0 %v254
    %1497 = vmatprep.subr.bf16.mxu0 %v251
    %1498 = vmatpush1.bf16.msra.mxu0 %v250
    %1499 = vmatprep.subr.bf16.mxu0 0
    %1500 = vmatpush2.bf16.msra.mxu0 0
    %1501 = vmatprep.subr.bf16.mxu0 0
    %1502 = vmatpush2.bf16.msra.mxu0 0
    %1503 = vmatprep.subr.bf16.mxu0 0
    %1504 = vmatpush2.bf16.msra.mxu0 0
    %1505 = vmatprep.subr.bf16.mxu0 0
    %1506 = vmatpush2.bf16.msra.mxu0 0
    %1507 = vmatprep.subr.bf16.mxu0 0
    %1508 = vmatpush2.bf16.msra.mxu0 0
    %1509 = vmatprep.subr.bf16.mxu0 0
    %1510 = vmatpush2.bf16.msra.mxu0 0
    %1511 = vmatprep.subr.bf16.mxu0 0
    %1512 = vmatpush2.bf16.msra.mxu0 0
    %1513 = vmatprep.subr.bf16.mxu0 0
    %1514 = vmatpush2.bf16.msra.mxu0 0
    %1515 = vmatprep.mubr.bf16.mxu0 0
    %1516 = vmatmul.mubr.bf16.gmra.mxu0 %v1482
    %v1517 = vpop.f32.mrf.mxu0
    %v1518 = vadd.f32 0.0, %v1517
    %v1519 = vpop.f32.mrf.mxu0
    %v1520 = vadd.f32 0.0, %v1519
    %v1521 = vpop.f32.mrf.mxu0
    %v1522 = vadd.f32 0.0, %v1521
    %v1523 = vpop.f32.mrf.mxu0
    %v1524 = vadd.f32 0.0, %v1523
    %1525 = vdwg.mxu0
    %1526 = vmatprep.subr.bf16.mxu0 %v281
    %1527 = vmatpush1.bf16.msra.mxu0 %v280
    %1528 = vmatprep.subr.bf16.mxu0 %v277
    %1529 = vmatpush1.bf16.msra.mxu0 %v276
    %1530 = vmatprep.subr.bf16.mxu0 %v273
    %1531 = vmatpush1.bf16.msra.mxu0 %v272
    %1532 = vmatprep.subr.bf16.mxu0 %v269
    %1533 = vmatpush1.bf16.msra.mxu0 %v268
    %1534 = vmatprep.subr.bf16.mxu0 %v265
    %1535 = vmatpush1.bf16.msra.mxu0 %v264
    %1536 = vmatprep.subr.bf16.mxu0 %v261
    %1537 = vmatpush1.bf16.msra.mxu0 %v260
    %1538 = vmatprep.subr.bf16.mxu0 %v257
    %1539 = vmatpush1.bf16.msra.mxu0 %v256
    %1540 = vmatprep.subr.bf16.mxu0 %v253
    %1541 = vmatpush1.bf16.msra.mxu0 %v252
    %1542 = vmatprep.subr.bf16.mxu0 0
    %1543 = vmatpush2.bf16.msra.mxu0 0
    %1544 = vmatprep.subr.bf16.mxu0 0
    %1545 = vmatpush2.bf16.msra.mxu0 0
    %1546 = vmatprep.subr.bf16.mxu0 0
    %1547 = vmatpush2.bf16.msra.mxu0 0
    %1548 = vmatprep.subr.bf16.mxu0 0
    %1549 = vmatpush2.bf16.msra.mxu0 0
    %1550 = vmatprep.subr.bf16.mxu0 0
    %1551 = vmatpush2.bf16.msra.mxu0 0
    %1552 = vmatprep.subr.bf16.mxu0 0
    %1553 = vmatpush2.bf16.msra.mxu0 0
    %1554 = vmatprep.subr.bf16.mxu0 0
    %1555 = vmatpush2.bf16.msra.mxu0 0
    %1556 = vmatprep.subr.bf16.mxu0 0
    %1557 = vmatpush2.bf16.msra.mxu0 0
    %1558 = vmatprep.mubr.bf16.mxu0 0
    %1559 = vmatmul.mubr.bf16.gmra.mxu0 %v1482
    %v1560 = vpop.f32.mrf.mxu0
    %v1561 = vadd.f32 0.0, %v1560
    %v1562 = vpop.f32.mrf.mxu0
    %v1563 = vadd.f32 0.0, %v1562
    %v1564 = vpop.f32.mrf.mxu0
    %v1565 = vadd.f32 0.0, %v1564
    %v1566 = vpop.f32.mrf.mxu0
    %v1567 = vadd.f32 0.0, %v1566
    %1568 = vdwg.mxu0
    %v1569 = vadd.f32 %v1474, %v1518
    %v1570 = vadd.f32 %v1475, %v1520
    %v1571 = vadd.f32 %v1476, %v1561
    %v1572 = vadd.f32 %v1477, %v1563
    %v1573 = vadd.f32 %v1478, %v1522
    %v1574 = vadd.f32 %v1479, %v1524
    %v1575 = vadd.f32 %v1480, %v1565
    %v1576 = vadd.f32 %v1481, %v1567
    %v1577 = vxor.u32 %v1569, 2147483648
    %v1578 = vxor.u32 %v1570, 2147483648
    %v1579 = vxor.u32 %v1571, 2147483648
    %v1580 = vxor.u32 %v1573, 2147483648
    %v1581 = vxor.u32 %v1574, 2147483648
    %v1582 = vxor.u32 %v1575, 2147483648
    %v1583 = vmul.f32 %v1577, 1.442695
    %v1584 = vpow.pop %v1583
    %v1585 = vmul.f32 %v1578, 1.442695
    %v1586 = vpow.pop %v1585
    %v1587 = vmul.f32 %v1579, 1.442695
    %v1588 = vpow.pop %v1587
    %v1589 = vmul.f32 %v1580, 1.442695
    %v1590 = vpow.pop %v1589
    %v1591 = vmul.f32 %v1581, 1.442695
    %v1592 = vpow.pop %v1591
    %v1593 = vmul.f32 %v1582, 1.442695
    %v1594 = vpow.pop %v1593
    %v1595 = vadd.f32 %v1584, 1.0
    %v1596 = vadd.f32 %v1586, 1.0
    %v1597 = vadd.f32 %v1588, 1.0
    %v1598 = vadd.f32 %v1590, 1.0
    %v1599 = vadd.f32 %v1592, 1.0
    %v1600 = vadd.f32 %v1594, 1.0
    %v1601 = vrcp.pop %v1595
    %v1602 = vmul.f32 1.0, %v1601
    %v1603 = vrcp.pop %v1596
    %v1604 = vmul.f32 1.0, %v1603
    %v1605 = vrcp.pop %v1597
    %v1606 = vmul.f32 1.0, %v1605
    %v1607 = vrcp.pop %v1598
    %v1608 = vmul.f32 1.0, %v1607
    %v1609 = vrcp.pop %v1599
    %v1610 = vmul.f32 1.0, %v1609
    %v1611 = vrcp.pop %v1600
    %v1612 = vmul.f32 1.0, %v1611
    %v1613 = vtanh.pop %v1572
    %v1614 = vtanh.pop %v1576
    %v1615 = vmul.f32 %v1604, %v1452
    %v1616 = vmul.f32 %v1610, %v1453
    %v1617 = vmul.f32 %v1602, %v1613
    %v1618 = vmul.f32 %v1608, %v1614
    %v1619 = vadd.f32 %v1615, %v1617
    %v1620 = vadd.f32 %v1616, %v1618
    %v1621 = vtanh.pop %v1619
    %v1622 = vtanh.pop %v1620
    %v1623 = vmul.f32 %v1606, %v1621
    %v1624 = vmul.f32 %v1612, %v1622
    %v1625 = vld [vmem:[%s2] sm:$0xff]
    %v1626 = vld [vmem:[%s2 + $0x8] sm:$0xff]
    %v1627 = vmul.f32 %v1623, %v1625
    %v1628 = vmul.f32 %v1624, %v1626
    %v1629 = vld [vmem:[%s6] sm:$0x1]
    %v1631 = vlaneseq
    %v1632 = vshrl.u32 %v1631, 7
    %v1633 = vsub.s32 0, %v1632
    %v1634 = vrot.slane %v1629, %v1633
    %v1636 = vmul.f32 %v1627, %v1634
    %v1637 = vmul.f32 %v1628, %v1634
    %1638 = vadd.xlane.f32.xlu0 %v1636
    %v1639 = vpop.xlane.xlu0 %1638
    %1640 = vadd.xlane.f32.xlu0 %v1637
    %v1641 = vpop.xlane.xlu0 %1640
    %v1642 = vld [vmem:[#allocation2] sm:$0x1]
    %v1644 = vlaneseq
    %v1645 = vshrl.u32 %v1644, 7
    %v1646 = vsub.s32 0, %v1645
    %v1647 = vrot.slane %v1642, %v1646
    %v1649 = vadd.f32 %v1639, %v1647
    %v1650 = vadd.f32 %v1641, %v1647
    %vm1651 = vcmask 7168
    %1652 = vst.msk [vmem:[%s8] sm:$0xff] %vm1651, %v1649
    %1653 = vst.msk [vmem:[%s8 + $0x8] sm:$0xff] %vm1651, %v1650
    // Predicated region
    $region38: #{tpu_custom_call.1} parent=1 // pred_check
      _
    $region39: #{tpu_custom_call.1} parent=1 // pred_check_branch
      %1655 = sbr.rel (0) target = $region41
    $region40: #{tpu_custom_call.1} parent=1 // pred_region
      _
    $region41: #{tpu_custom_call.1} parent=1 // pred_fallthru
      _
    // Predicated region
    $region42: #{tpu_custom_call.1} parent=1 // pred_check
      _
    $region43: #{tpu_custom_call.1} parent=1 // pred_check_branch
      %1657 = sbr.rel (0) target = $region45
    $region44: #{tpu_custom_call.1} parent=1 // pred_region
      _
    $region45: #{tpu_custom_call.1} parent=1 // pred_fallthru
      _
    %1658 = vsyncpa [#allocation4], 1

</llo_original>
